<compile_context>
chip_gen: v7x
topology: tpu7x:2x2x1
jax: 0.10.0
libtpu: 0.0.40
codegen_flags: <defaults>
</compile_context>

<pallas_src>
import jax
import jax.numpy as jnp
from jax import lax
from jax.experimental import pallas as pl
from jax.experimental.pallas import tpu as pltpu


def _fremlp_kernel(w1_ref, b1_ref, w2_ref, b2_ref,   # scalar-prefetch (SMEM)
                   re_ref, im_ref,                    # (1, C, rows, 128) VMEM
                   real_ref, imag_ref):               # (1, C, rows, 128) VMEM
    E, C = w1_ref.shape

    # Stage 1: per-channel |z|^2, 1/|z| and |z| = |z|^2 * rsqrt(|z|^2).
    mag, inv, nz = [], [], []
    for c in range(C):
        re_c = re_ref[0, c]
        im_c = im_ref[0, c]
        msq = re_c * re_c + im_c * im_c
        nz_c = msq > 0.0
        inv_c = lax.rsqrt(jnp.where(nz_c, msq, 1.0))
        mag.append(msq * inv_c)
        inv.append(inv_c)
        nz.append(nz_c)

    # 1x1 conv (C->E) + LeakyReLU(0.1) + 1x1 conv (E->C), unrolled as
    # scalar (SMEM) x slab (rows,128) FMAs on the VPU.  MXU would be <2%
    # utilized with K=C=4.  Each hidden slab h_e is consumed immediately.
    o = [None] * C
    for e in range(E):
        acc = w1_ref[e, 0] * mag[0]
        for c in range(1, C):
            acc = acc + w1_ref[e, c] * mag[c]
        acc = acc + b1_ref[e]
        h_e = jnp.maximum(acc, 0.1 * acc)          # LeakyReLU(0.1)
        for c in range(C):
            t = w2_ref[c, e] * h_e
            o[c] = t if o[c] is None else o[c] + t

    # Recombine processed magnitude with the original phase without trig:
    #   out = o * exp(i*angle(z)) = o * (re + i*im) / |z| ; torch.angle(0) = 0
    #   => real = o, imag = 0 for zero-magnitude bins.
    for c in range(C):
        o_c = o[c] + b2_ref[c]
        t = o_c * inv[c]
        re_c = re_ref[0, c]
        im_c = im_ref[0, c]
        real_ref[0, c] = jnp.where(nz[c], re_c * t, o_c)
        imag_ref[0, c] = im_c * t                  # im==0 on zero bins -> 0


def _fremlp_pointwise(re3, im3, w1, b1, w2, b2, *,
                      target_rows=1024, min_steps=8):
    """re3/im3: (N, C, S) float32.  Returns (real, imag), each (N, C, S)."""
    N, C, S = re3.shape

    # Pad the flattened frequency axis to a multiple of 8*128 so it repacks as
    # (rows, 128) with rows a multiple of 8 (full f32 vregs).  Pad is <= 1023
    # elements and should fuse with the surrounding real/imag extraction.
    S_pad = pl.cdiv(S, 1024) * 1024
    if S_pad != S:
        pad = ((0, 0), (0, 0), (0, S_pad - S))
        re3 = jnp.pad(re3, pad)
        im3 = jnp.pad(im3, pad)
    R = S_pad // 128
    re4 = re3.reshape(N, C, R, 128)
    im4 = im3.reshape(N, C, R, 128)

    # rows per tile: target ~1024 (2 MiB/stream/step at C=4), multiple of 8,
    # clamped to R, shrunk while keeping >= min_steps grid steps so both v7x
    # TensorCores get work and the pipeline still overlaps.
    rows = min(target_rows, R)
    rows -= rows % 8
    while rows > 8 and N * pl.cdiv(R, rows) < min_steps:
        rows = max(8, (rows // 2) - ((rows // 2) % 8))

    grid = (N, pl.cdiv(R, rows))   # ragged last row-tile handled by Pallas
    data_spec = pl.BlockSpec((1, C, rows, 128), lambda n, r, *_: (n, 0, r, 0))

    real4, imag4 = pl.pallas_call(
        _fremlp_kernel,
        out_shape=(jax.ShapeDtypeStruct((N, C, R, 128), jnp.float32),
                   jax.ShapeDtypeStruct((N, C, R, 128), jnp.float32)),
        grid_spec=pltpu.PrefetchScalarGridSpec(
            num_scalar_prefetch=4,       # w1, b1, w2, b2 -> SMEM scalars
            grid=grid,
            in_specs=[data_spec, data_spec],
            out_specs=[data_spec, data_spec],
        ),
        compiler_params=pltpu.CompilerParams(
            dimension_semantics=("parallel", "parallel"),
            vmem_limit_bytes=48 * 1024 * 1024),
    )(w1.astype(jnp.float32), b1.astype(jnp.float32),
      w2.astype(jnp.float32), b2.astype(jnp.float32),
      re4, im4)

    real = real4.reshape(N, C, S_pad)[..., :S]
    imag = imag4.reshape(N, C, S_pad)[..., :S]
    return real, imag


@jax.jit
def fremlp_forward(x, w1, b1, w2, b2):
    """x: (N, C, H, W) float32.
    w1: (E, C), b1: (E,), w2: (C, E), b2: (C,)  (PyTorch Conv2d (out,in) layout)."""
    N, C, H, W = x.shape
    # TODO(synk): FFT has no Pallas equivalent; rfft2/irfft2 run via jnp.fft (XLA).
    x_freq = jnp.fft.rfft2(x, norm='backward')           # (N, C, H, Wf) complex64
    Wf = x_freq.shape[-1]
    S = H * Wf

    # Free reshapes only — no transposes.
    re3 = jnp.real(x_freq).reshape(N, C, S).astype(jnp.float32)
    im3 = jnp.imag(x_freq).reshape(N, C, S).astype(jnp.float32)

    real3, imag3 = _fremlp_pointwise(re3, im3, w1, b1, w2, b2)

    x_out = lax.complex(real3.reshape(N, C, H, Wf), imag3.reshape(N, C, H, Wf))
    return jnp.fft.irfft2(x_out, s=(H, W), norm='backward')


def init_params(key, nc, expand=2):
    """Deterministic init matching Conv2d(nc, expand*nc, 1) / Conv2d(expand*nc, nc, 1).

    Weights stored in PyTorch conv (out_c, in_c) layout: w1 (expand*nc, nc),
    w2 (nc, expand*nc)."""
    e = expand * nc
    k1, k2, k3, k4 = jax.random.split(key, 4)
    s1 = 1.0 / (nc ** 0.5)   # Conv2d default: U(-1/sqrt(fan_in), 1/sqrt(fan_in))
    s2 = 1.0 / (e ** 0.5)
    w1 = jax.random.uniform(k1, (e, nc), jnp.float32, -s1, s1)
    b1 = jax.random.uniform(k2, (e,), jnp.float32, -s1, s1)
    w2 = jax.random.uniform(k3, (nc, e), jnp.float32, -s2, s2)
    b2 = jax.random.uniform(k4, (nc,), jnp.float32, -s2, s2)
    return w1, b1, w2, b2


if __name__ == "__main__":
    key = jax.random.PRNGKey(0)
    kx, kp = jax.random.split(key)

    N, C, H, W = 2, 4, 16, 16
    x = jax.random.normal(kx, (N, C, H, W), jnp.float32)
    w1, b1, w2, b2 = init_params(kp, nc=C, expand=2)

    out = jax.block_until_ready(fremlp_forward(x, w1, b1, w2, b2))
    assert out.shape == (N, C, H, W), out.shape

    # Pure-JAX reference of the original module semantics (mag/angle + cos/sin).
    xf = jnp.fft.rfft2(x, norm='backward')
    mag, pha = jnp.abs(xf), jnp.angle(xf)
    h = jnp.einsum('ec,nchw->nehw', w1, mag) + b1[None, :, None, None]
    h = jnp.where(h >= 0, h, 0.1 * h)
    o = jnp.einsum('ce,nehw->nchw', w2, h) + b2[None, :, None, None]
    ref = jnp.fft.irfft2(lax.complex(o * jnp.cos(pha), o * jnp.sin(pha)),
                         s=(H, W), norm='backward')
    assert jnp.allclose(out, ref, atol=1e-4, rtol=1e-4), \
        float(jnp.max(jnp.abs(out - ref)))

    print("KERNEL_OK")
</pallas_src>

<mosaic_0001>
module attributes {stable_mosaic.version = 11 : i64} {
  func.func @_fremlp_kernel(%arg0: i32, %arg1: i32, %arg2: memref<8x4xf32, #tpu.memory_space<smem>>, %arg3: memref<8xf32, #tpu.memory_space<smem>>, %arg4: memref<4x8xf32, #tpu.memory_space<smem>>, %arg5: memref<4xf32, #tpu.memory_space<smem>>, %arg6: memref<1x4x8x128xf32, #tpu.memory_space<vmem>>, %arg7: memref<1x4x8x128xf32, #tpu.memory_space<vmem>>, %arg8: memref<1x4x8x128xf32, #tpu.memory_space<vmem>>, %arg9: memref<1x4x8x128xf32, #tpu.memory_space<vmem>>) attributes {dimension_semantics = [#tpu.dimension_semantics<parallel>, #tpu.dimension_semantics<parallel>], iteration_bounds = array<i64: 2, 1>, scalar_prefetch = 4 : i64, scratch_operands = 0 : i64, tpu.core_type = #tpu.core_type<tc>, window_params = [{transform_indices = @transform_0, window_bounds = array<i64: 1, 4, 8, 128>}, {transform_indices = @transform_1, window_bounds = array<i64: 1, 4, 8, 128>}, {transform_indices = @transform_2, window_bounds = array<i64: 1, 4, 8, 128>}, {transform_indices = @transform_3, window_bounds = array<i64: 1, 4, 8, 128>}]} {
    %c0 = arith.constant 0 : index
    %c0_0 = arith.constant 0 : index
    %c0_1 = arith.constant 0 : index
    %c0_2 = arith.constant 0 : index
    %0 = vector.load %arg6[%c0, %c0_0, %c0_1, %c0_2] : memref<1x4x8x128xf32, #tpu.memory_space<vmem>>, vector<1x1x8x128xf32>
    %1 = vector.shape_cast %0 : vector<1x1x8x128xf32> to vector<8x128xf32>
    %c0_3 = arith.constant 0 : index
    %c0_4 = arith.constant 0 : index
    %c0_5 = arith.constant 0 : index
    %c0_6 = arith.constant 0 : index
    %2 = vector.load %arg7[%c0_3, %c0_4, %c0_5, %c0_6] : memref<1x4x8x128xf32, #tpu.memory_space<vmem>>, vector<1x1x8x128xf32>
    %3 = vector.shape_cast %2 : vector<1x1x8x128xf32> to vector<8x128xf32>
    %4 = arith.mulf %1, %1 : vector<8x128xf32>
    %5 = arith.mulf %3, %3 : vector<8x128xf32>
    %6 = arith.addf %4, %5 : vector<8x128xf32>
    %cst = arith.constant 0.000000e+00 : f32
    %7 = vector.broadcast %cst : f32 to vector<8x128xf32>
    %8 = arith.cmpf ogt, %6, %7 : vector<8x128xf32>
    %cst_7 = arith.constant 1.000000e+00 : f32
    %9 = vector.broadcast %cst_7 : f32 to vector<8x128xf32>
    %10 = arith.select %8, %6, %9 : vector<8x128xi1>, vector<8x128xf32>
    %11 = math.rsqrt %10 : vector<8x128xf32>
    %12 = arith.mulf %6, %11 : vector<8x128xf32>
    %c0_8 = arith.constant 0 : index
    %c1 = arith.constant 1 : index
    %c0_9 = arith.constant 0 : index
    %c0_10 = arith.constant 0 : index
    %13 = vector.load %arg6[%c0_8, %c1, %c0_9, %c0_10] : memref<1x4x8x128xf32, #tpu.memory_space<vmem>>, vector<1x1x8x128xf32>
    %14 = vector.shape_cast %13 : vector<1x1x8x128xf32> to vector<8x128xf32>
    %c0_11 = arith.constant 0 : index
    %c1_12 = arith.constant 1 : index
    %c0_13 = arith.constant 0 : index
    %c0_14 = arith.constant 0 : index
    %15 = vector.load %arg7[%c0_11, %c1_12, %c0_13, %c0_14] : memref<1x4x8x128xf32, #tpu.memory_space<vmem>>, vector<1x1x8x128xf32>
    %16 = vector.shape_cast %15 : vector<1x1x8x128xf32> to vector<8x128xf32>
    %17 = arith.mulf %14, %14 : vector<8x128xf32>
    %18 = arith.mulf %16, %16 : vector<8x128xf32>
    %19 = arith.addf %17, %18 : vector<8x128xf32>
    %cst_15 = arith.constant 0.000000e+00 : f32
    %20 = vector.broadcast %cst_15 : f32 to vector<8x128xf32>
    %21 = arith.cmpf ogt, %19, %20 : vector<8x128xf32>
    %cst_16 = arith.constant 1.000000e+00 : f32
    %22 = vector.broadcast %cst_16 : f32 to vector<8x128xf32>
    %23 = arith.select %21, %19, %22 : vector<8x128xi1>, vector<8x128xf32>
    %24 = math.rsqrt %23 : vector<8x128xf32>
    %25 = arith.mulf %19, %24 : vector<8x128xf32>
    %c0_17 = arith.constant 0 : index
    %c2 = arith.constant 2 : index
    %c0_18 = arith.constant 0 : index
    %c0_19 = arith.constant 0 : index
    %26 = vector.load %arg6[%c0_17, %c2, %c0_18, %c0_19] : memref<1x4x8x128xf32, #tpu.memory_space<vmem>>, vector<1x1x8x128xf32>
    %27 = vector.shape_cast %26 : vector<1x1x8x128xf32> to vector<8x128xf32>
    %c0_20 = arith.constant 0 : index
    %c2_21 = arith.constant 2 : index
    %c0_22 = arith.constant 0 : index
    %c0_23 = arith.constant 0 : index
    %28 = vector.load %arg7[%c0_20, %c2_21, %c0_22, %c0_23] : memref<1x4x8x128xf32, #tpu.memory_space<vmem>>, vector<1x1x8x128xf32>
    %29 = vector.shape_cast %28 : vector<1x1x8x128xf32> to vector<8x128xf32>
    %30 = arith.mulf %27, %27 : vector<8x128xf32>
    %31 = arith.mulf %29, %29 : vector<8x128xf32>
    %32 = arith.addf %30, %31 : vector<8x128xf32>
    %cst_24 = arith.constant 0.000000e+00 : f32
    %33 = vector.broadcast %cst_24 : f32 to vector<8x128xf32>
    %34 = arith.cmpf ogt, %32, %33 : vector<8x128xf32>
    %cst_25 = arith.constant 1.000000e+00 : f32
    %35 = vector.broadcast %cst_25 : f32 to vector<8x128xf32>
    %36 = arith.select %34, %32, %35 : vector<8x128xi1>, vector<8x128xf32>
    %37 = math.rsqrt %36 : vector<8x128xf32>
    %38 = arith.mulf %32, %37 : vector<8x128xf32>
    %c0_26 = arith.constant 0 : index
    %c3 = arith.constant 3 : index
    %c0_27 = arith.constant 0 : index
    %c0_28 = arith.constant 0 : index
    %39 = vector.load %arg6[%c0_26, %c3, %c0_27, %c0_28] : memref<1x4x8x128xf32, #tpu.memory_space<vmem>>, vector<1x1x8x128xf32>
    %40 = vector.shape_cast %39 : vector<1x1x8x128xf32> to vector<8x128xf32>
    %c0_29 = arith.constant 0 : index
    %c3_30 = arith.constant 3 : index
    %c0_31 = arith.constant 0 : index
    %c0_32 = arith.constant 0 : index
    %41 = vector.load %arg7[%c0_29, %c3_30, %c0_31, %c0_32] : memref<1x4x8x128xf32, #tpu.memory_space<vmem>>, vector<1x1x8x128xf32>
    %42 = vector.shape_cast %41 : vector<1x1x8x128xf32> to vector<8x128xf32>
    %43 = arith.mulf %40, %40 : vector<8x128xf32>
    %44 = arith.mulf %42, %42 : vector<8x128xf32>
    %45 = arith.addf %43, %44 : vector<8x128xf32>
    %cst_33 = arith.constant 0.000000e+00 : f32
    %46 = vector.broadcast %cst_33 : f32 to vector<8x128xf32>
    %47 = arith.cmpf ogt, %45, %46 : vector<8x128xf32>
    %cst_34 = arith.constant 1.000000e+00 : f32
    %48 = vector.broadcast %cst_34 : f32 to vector<8x128xf32>
    %49 = arith.select %47, %45, %48 : vector<8x128xi1>, vector<8x128xf32>
    %50 = math.rsqrt %49 : vector<8x128xf32>
    %51 = arith.mulf %45, %50 : vector<8x128xf32>
    %c0_35 = arith.constant 0 : index
    %c0_36 = arith.constant 0 : index
    %52 = memref.load %arg2[%c0_35, %c0_36] : memref<8x4xf32, #tpu.memory_space<smem>>
    %53 = vector.broadcast %52 : f32 to vector<8x128xf32>
    %54 = arith.mulf %53, %12 : vector<8x128xf32>
    %c0_37 = arith.constant 0 : index
    %c1_38 = arith.constant 1 : index
    %55 = memref.load %arg2[%c0_37, %c1_38] : memref<8x4xf32, #tpu.memory_space<smem>>
    %56 = vector.broadcast %55 : f32 to vector<8x128xf32>
    %57 = arith.mulf %56, %25 : vector<8x128xf32>
    %58 = arith.addf %54, %57 : vector<8x128xf32>
    %c0_39 = arith.constant 0 : index
    %c2_40 = arith.constant 2 : index
    %59 = memref.load %arg2[%c0_39, %c2_40] : memref<8x4xf32, #tpu.memory_space<smem>>
    %60 = vector.broadcast %59 : f32 to vector<8x128xf32>
    %61 = arith.mulf %60, %38 : vector<8x128xf32>
    %62 = arith.addf %58, %61 : vector<8x128xf32>
    %c0_41 = arith.constant 0 : index
    %c3_42 = arith.constant 3 : index
    %63 = memref.load %arg2[%c0_41, %c3_42] : memref<8x4xf32, #tpu.memory_space<smem>>
    %64 = vector.broadcast %63 : f32 to vector<8x128xf32>
    %65 = arith.mulf %64, %51 : vector<8x128xf32>
    %66 = arith.addf %62, %65 : vector<8x128xf32>
    %c0_43 = arith.constant 0 : index
    %67 = memref.load %arg3[%c0_43] : memref<8xf32, #tpu.memory_space<smem>>
    %68 = vector.broadcast %67 : f32 to vector<8x128xf32>
    %69 = arith.addf %66, %68 : vector<8x128xf32>
    %cst_44 = arith.constant 1.000000e-01 : f32
    %70 = vector.broadcast %cst_44 : f32 to vector<8x128xf32>
    %71 = arith.mulf %70, %69 : vector<8x128xf32>
    %72 = arith.maximumf %69, %71 : vector<8x128xf32>
    %c0_45 = arith.constant 0 : index
    %c0_46 = arith.constant 0 : index
    %73 = memref.load %arg4[%c0_45, %c0_46] : memref<4x8xf32, #tpu.memory_space<smem>>
    %74 = vector.broadcast %73 : f32 to vector<8x128xf32>
    %75 = arith.mulf %74, %72 : vector<8x128xf32>
    %c1_47 = arith.constant 1 : index
    %c0_48 = arith.constant 0 : index
    %76 = memref.load %arg4[%c1_47, %c0_48] : memref<4x8xf32, #tpu.memory_space<smem>>
    %77 = vector.broadcast %76 : f32 to vector<8x128xf32>
    %78 = arith.mulf %77, %72 : vector<8x128xf32>
    %c2_49 = arith.constant 2 : index
    %c0_50 = arith.constant 0 : index
    %79 = memref.load %arg4[%c2_49, %c0_50] : memref<4x8xf32, #tpu.memory_space<smem>>
    %80 = vector.broadcast %79 : f32 to vector<8x128xf32>
    %81 = arith.mulf %80, %72 : vector<8x128xf32>
    %c3_51 = arith.constant 3 : index
    %c0_52 = arith.constant 0 : index
    %82 = memref.load %arg4[%c3_51, %c0_52] : memref<4x8xf32, #tpu.memory_space<smem>>
    %83 = vector.broadcast %82 : f32 to vector<8x128xf32>
    %84 = arith.mulf %83, %72 : vector<8x128xf32>
    %c1_53 = arith.constant 1 : index
    %c0_54 = arith.constant 0 : index
    %85 = memref.load %arg2[%c1_53, %c0_54] : memref<8x4xf32, #tpu.memory_space<smem>>
    %86 = vector.broadcast %85 : f32 to vector<8x128xf32>
    %87 = arith.mulf %86, %12 : vector<8x128xf32>
    %c1_55 = arith.constant 1 : index
    %c1_56 = arith.constant 1 : index
    %88 = memref.load %arg2[%c1_55, %c1_56] : memref<8x4xf32, #tpu.memory_space<smem>>
    %89 = vector.broadcast %88 : f32 to vector<8x128xf32>
    %90 = arith.mulf %89, %25 : vector<8x128xf32>
    %91 = arith.addf %87, %90 : vector<8x128xf32>
    %c1_57 = arith.constant 1 : index
    %c2_58 = arith.constant 2 : index
    %92 = memref.load %arg2[%c1_57, %c2_58] : memref<8x4xf32, #tpu.memory_space<smem>>
    %93 = vector.broadcast %92 : f32 to vector<8x128xf32>
    %94 = arith.mulf %93, %38 : vector<8x128xf32>
    %95 = arith.addf %91, %94 : vector<8x128xf32>
    %c1_59 = arith.constant 1 : index
    %c3_60 = arith.constant 3 : index
    %96 = memref.load %arg2[%c1_59, %c3_60] : memref<8x4xf32, #tpu.memory_space<smem>>
    %97 = vector.broadcast %96 : f32 to vector<8x128xf32>
    %98 = arith.mulf %97, %51 : vector<8x128xf32>
    %99 = arith.addf %95, %98 : vector<8x128xf32>
    %c1_61 = arith.constant 1 : index
    %100 = memref.load %arg3[%c1_61] : memref<8xf32, #tpu.memory_space<smem>>
    %101 = vector.broadcast %100 : f32 to vector<8x128xf32>
    %102 = arith.addf %99, %101 : vector<8x128xf32>
    %cst_62 = arith.constant 1.000000e-01 : f32
    %103 = vector.broadcast %cst_62 : f32 to vector<8x128xf32>
    %104 = arith.mulf %103, %102 : vector<8x128xf32>
    %105 = arith.maximumf %102, %104 : vector<8x128xf32>
    %c0_63 = arith.constant 0 : index
    %c1_64 = arith.constant 1 : index
    %106 = memref.load %arg4[%c0_63, %c1_64] : memref<4x8xf32, #tpu.memory_space<smem>>
    %107 = vector.broadcast %106 : f32 to vector<8x128xf32>
    %108 = arith.mulf %107, %105 : vector<8x128xf32>
    %109 = arith.addf %75, %108 : vector<8x128xf32>
    %c1_65 = arith.constant 1 : index
    %c1_66 = arith.constant 1 : index
    %110 = memref.load %arg4[%c1_65, %c1_66] : memref<4x8xf32, #tpu.memory_space<smem>>
    %111 = vector.broadcast %110 : f32 to vector<8x128xf32>
    %112 = arith.mulf %111, %105 : vector<8x128xf32>
    %113 = arith.addf %78, %112 : vector<8x128xf32>
    %c2_67 = arith.constant 2 : index
    %c1_68 = arith.constant 1 : index
    %114 = memref.load %arg4[%c2_67, %c1_68] : memref<4x8xf32, #tpu.memory_space<smem>>
    %115 = vector.broadcast %114 : f32 to vector<8x128xf32>
    %116 = arith.mulf %115, %105 : vector<8x128xf32>
    %117 = arith.addf %81, %116 : vector<8x128xf32>
    %c3_69 = arith.constant 3 : index
    %c1_70 = arith.constant 1 : index
    %118 = memref.load %arg4[%c3_69, %c1_70] : memref<4x8xf32, #tpu.memory_space<smem>>
    %119 = vector.broadcast %118 : f32 to vector<8x128xf32>
    %120 = arith.mulf %119, %105 : vector<8x128xf32>
    %121 = arith.addf %84, %120 : vector<8x128xf32>
    %c2_71 = arith.constant 2 : index
    %c0_72 = arith.constant 0 : index
    %122 = memref.load %arg2[%c2_71, %c0_72] : memref<8x4xf32, #tpu.memory_space<smem>>
    %123 = vector.broadcast %122 : f32 to vector<8x128xf32>
    %124 = arith.mulf %123, %12 : vector<8x128xf32>
    %c2_73 = arith.constant 2 : index
    %c1_74 = arith.constant 1 : index
    %125 = memref.load %arg2[%c2_73, %c1_74] : memref<8x4xf32, #tpu.memory_space<smem>>
    %126 = vector.broadcast %125 : f32 to vector<8x128xf32>
    %127 = arith.mulf %126, %25 : vector<8x128xf32>
    %128 = arith.addf %124, %127 : vector<8x128xf32>
    %c2_75 = arith.constant 2 : index
    %c2_76 = arith.constant 2 : index
    %129 = memref.load %arg2[%c2_75, %c2_76] : memref<8x4xf32, #tpu.memory_space<smem>>
    %130 = vector.broadcast %129 : f32 to vector<8x128xf32>
    %131 = arith.mulf %130, %38 : vector<8x128xf32>
    %132 = arith.addf %128, %131 : vector<8x128xf32>
    %c2_77 = arith.constant 2 : index
    %c3_78 = arith.constant 3 : index
    %133 = memref.load %arg2[%c2_77, %c3_78] : memref<8x4xf32, #tpu.memory_space<smem>>
    %134 = vector.broadcast %133 : f32 to vector<8x128xf32>
    %135 = arith.mulf %134, %51 : vector<8x128xf32>
    %136 = arith.addf %132, %135 : vector<8x128xf32>
    %c2_79 = arith.constant 2 : index
    %137 = memref.load %arg3[%c2_79] : memref<8xf32, #tpu.memory_space<smem>>
    %138 = vector.broadcast %137 : f32 to vector<8x128xf32>
    %139 = arith.addf %136, %138 : vector<8x128xf32>
    %cst_80 = arith.constant 1.000000e-01 : f32
    %140 = vector.broadcast %cst_80 : f32 to vector<8x128xf32>
    %141 = arith.mulf %140, %139 : vector<8x128xf32>
    %142 = arith.maximumf %139, %141 : vector<8x128xf32>
    %c0_81 = arith.constant 0 : index
    %c2_82 = arith.constant 2 : index
    %143 = memref.load %arg4[%c0_81, %c2_82] : memref<4x8xf32, #tpu.memory_space<smem>>
    %144 = vector.broadcast %143 : f32 to vector<8x128xf32>
    %145 = arith.mulf %144, %142 : vector<8x128xf32>
    %146 = arith.addf %109, %145 : vector<8x128xf32>
    %c1_83 = arith.constant 1 : index
    %c2_84 = arith.constant 2 : index
    %147 = memref.load %arg4[%c1_83, %c2_84] : memref<4x8xf32, #tpu.memory_space<smem>>
    %148 = vector.broadcast %147 : f32 to vector<8x128xf32>
    %149 = arith.mulf %148, %142 : vector<8x128xf32>
    %150 = arith.addf %113, %149 : vector<8x128xf32>
    %c2_85 = arith.constant 2 : index
    %c2_86 = arith.constant 2 : index
    %151 = memref.load %arg4[%c2_85, %c2_86] : memref<4x8xf32, #tpu.memory_space<smem>>
    %152 = vector.broadcast %151 : f32 to vector<8x128xf32>
    %153 = arith.mulf %152, %142 : vector<8x128xf32>
    %154 = arith.addf %117, %153 : vector<8x128xf32>
    %c3_87 = arith.constant 3 : index
    %c2_88 = arith.constant 2 : index
    %155 = memref.load %arg4[%c3_87, %c2_88] : memref<4x8xf32, #tpu.memory_space<smem>>
    %156 = vector.broadcast %155 : f32 to vector<8x128xf32>
    %157 = arith.mulf %156, %142 : vector<8x128xf32>
    %158 = arith.addf %121, %157 : vector<8x128xf32>
    %c3_89 = arith.constant 3 : index
    %c0_90 = arith.constant 0 : index
    %159 = memref.load %arg2[%c3_89, %c0_90] : memref<8x4xf32, #tpu.memory_space<smem>>
    %160 = vector.broadcast %159 : f32 to vector<8x128xf32>
    %161 = arith.mulf %160, %12 : vector<8x128xf32>
    %c3_91 = arith.constant 3 : index
    %c1_92 = arith.constant 1 : index
    %162 = memref.load %arg2[%c3_91, %c1_92] : memref<8x4xf32, #tpu.memory_space<smem>>
    %163 = vector.broadcast %162 : f32 to vector<8x128xf32>
    %164 = arith.mulf %163, %25 : vector<8x128xf32>
    %165 = arith.addf %161, %164 : vector<8x128xf32>
    %c3_93 = arith.constant 3 : index
    %c2_94 = arith.constant 2 : index
    %166 = memref.load %arg2[%c3_93, %c2_94] : memref<8x4xf32, #tpu.memory_space<smem>>
    %167 = vector.broadcast %166 : f32 to vector<8x128xf32>
    %168 = arith.mulf %167, %38 : vector<8x128xf32>
    %169 = arith.addf %165, %168 : vector<8x128xf32>
    %c3_95 = arith.constant 3 : index
    %c3_96 = arith.constant 3 : index
    %170 = memref.load %arg2[%c3_95, %c3_96] : memref<8x4xf32, #tpu.memory_space<smem>>
    %171 = vector.broadcast %170 : f32 to vector<8x128xf32>
    %172 = arith.mulf %171, %51 : vector<8x128xf32>
    %173 = arith.addf %169, %172 : vector<8x128xf32>
    %c3_97 = arith.constant 3 : index
    %174 = memref.load %arg3[%c3_97] : memref<8xf32, #tpu.memory_space<smem>>
    %175 = vector.broadcast %174 : f32 to vector<8x128xf32>
    %176 = arith.addf %173, %175 : vector<8x128xf32>
    %cst_98 = arith.constant 1.000000e-01 : f32
    %177 = vector.broadcast %cst_98 : f32 to vector<8x128xf32>
    %178 = arith.mulf %177, %176 : vector<8x128xf32>
    %179 = arith.maximumf %176, %178 : vector<8x128xf32>
    %c0_99 = arith.constant 0 : index
    %c3_100 = arith.constant 3 : index
    %180 = memref.load %arg4[%c0_99, %c3_100] : memref<4x8xf32, #tpu.memory_space<smem>>
    %181 = vector.broadcast %180 : f32 to vector<8x128xf32>
    %182 = arith.mulf %181, %179 : vector<8x128xf32>
    %183 = arith.addf %146, %182 : vector<8x128xf32>
    %c1_101 = arith.constant 1 : index
    %c3_102 = arith.constant 3 : index
    %184 = memref.load %arg4[%c1_101, %c3_102] : memref<4x8xf32, #tpu.memory_space<smem>>
    %185 = vector.broadcast %184 : f32 to vector<8x128xf32>
    %186 = arith.mulf %185, %179 : vector<8x128xf32>
    %187 = arith.addf %150, %186 : vector<8x128xf32>
    %c2_103 = arith.constant 2 : index
    %c3_104 = arith.constant 3 : index
    %188 = memref.load %arg4[%c2_103, %c3_104] : memref<4x8xf32, #tpu.memory_space<smem>>
    %189 = vector.broadcast %188 : f32 to vector<8x128xf32>
    %190 = arith.mulf %189, %179 : vector<8x128xf32>
    %191 = arith.addf %154, %190 : vector<8x128xf32>
    %c3_105 = arith.constant 3 : index
    %c3_106 = arith.constant 3 : index
    %192 = memref.load %arg4[%c3_105, %c3_106] : memref<4x8xf32, #tpu.memory_space<smem>>
    %193 = vector.broadcast %192 : f32 to vector<8x128xf32>
    %194 = arith.mulf %193, %179 : vector<8x128xf32>
    %195 = arith.addf %158, %194 : vector<8x128xf32>
    %c4 = arith.constant 4 : index
    %c0_107 = arith.constant 0 : index
    %196 = memref.load %arg2[%c4, %c0_107] : memref<8x4xf32, #tpu.memory_space<smem>>
    %197 = vector.broadcast %196 : f32 to vector<8x128xf32>
    %198 = arith.mulf %197, %12 : vector<8x128xf32>
    %c4_108 = arith.constant 4 : index
    %c1_109 = arith.constant 1 : index
    %199 = memref.load %arg2[%c4_108, %c1_109] : memref<8x4xf32, #tpu.memory_space<smem>>
    %200 = vector.broadcast %199 : f32 to vector<8x128xf32>
    %201 = arith.mulf %200, %25 : vector<8x128xf32>
    %202 = arith.addf %198, %201 : vector<8x128xf32>
    %c4_110 = arith.constant 4 : index
    %c2_111 = arith.constant 2 : index
    %203 = memref.load %arg2[%c4_110, %c2_111] : memref<8x4xf32, #tpu.memory_space<smem>>
    %204 = vector.broadcast %203 : f32 to vector<8x128xf32>
    %205 = arith.mulf %204, %38 : vector<8x128xf32>
    %206 = arith.addf %202, %205 : vector<8x128xf32>
    %c4_112 = arith.constant 4 : index
    %c3_113 = arith.constant 3 : index
    %207 = memref.load %arg2[%c4_112, %c3_113] : memref<8x4xf32, #tpu.memory_space<smem>>
    %208 = vector.broadcast %207 : f32 to vector<8x128xf32>
    %209 = arith.mulf %208, %51 : vector<8x128xf32>
    %210 = arith.addf %206, %209 : vector<8x128xf32>
    %c4_114 = arith.constant 4 : index
    %211 = memref.load %arg3[%c4_114] : memref<8xf32, #tpu.memory_space<smem>>
    %212 = vector.broadcast %211 : f32 to vector<8x128xf32>
    %213 = arith.addf %210, %212 : vector<8x128xf32>
    %cst_115 = arith.constant 1.000000e-01 : f32
    %214 = vector.broadcast %cst_115 : f32 to vector<8x128xf32>
    %215 = arith.mulf %214, %213 : vector<8x128xf32>
    %216 = arith.maximumf %213, %215 : vector<8x128xf32>
    %c0_116 = arith.constant 0 : index
    %c4_117 = arith.constant 4 : index
    %217 = memref.load %arg4[%c0_116, %c4_117] : memref<4x8xf32, #tpu.memory_space<smem>>
    %218 = vector.broadcast %217 : f32 to vector<8x128xf32>
    %219 = arith.mulf %218, %216 : vector<8x128xf32>
    %220 = arith.addf %183, %219 : vector<8x128xf32>
    %c1_118 = arith.constant 1 : index
    %c4_119 = arith.constant 4 : index
    %221 = memref.load %arg4[%c1_118, %c4_119] : memref<4x8xf32, #tpu.memory_space<smem>>
    %222 = vector.broadcast %221 : f32 to vector<8x128xf32>
    %223 = arith.mulf %222, %216 : vector<8x128xf32>
    %224 = arith.addf %187, %223 : vector<8x128xf32>
    %c2_120 = arith.constant 2 : index
    %c4_121 = arith.constant 4 : index
    %225 = memref.load %arg4[%c2_120, %c4_121] : memref<4x8xf32, #tpu.memory_space<smem>>
    %226 = vector.broadcast %225 : f32 to vector<8x128xf32>
    %227 = arith.mulf %226, %216 : vector<8x128xf32>
    %228 = arith.addf %191, %227 : vector<8x128xf32>
    %c3_122 = arith.constant 3 : index
    %c4_123 = arith.constant 4 : index
    %229 = memref.load %arg4[%c3_122, %c4_123] : memref<4x8xf32, #tpu.memory_space<smem>>
    %230 = vector.broadcast %229 : f32 to vector<8x128xf32>
    %231 = arith.mulf %230, %216 : vector<8x128xf32>
    %232 = arith.addf %195, %231 : vector<8x128xf32>
    %c5 = arith.constant 5 : index
    %c0_124 = arith.constant 0 : index
    %233 = memref.load %arg2[%c5, %c0_124] : memref<8x4xf32, #tpu.memory_space<smem>>
    %234 = vector.broadcast %233 : f32 to vector<8x128xf32>
    %235 = arith.mulf %234, %12 : vector<8x128xf32>
    %c5_125 = arith.constant 5 : index
    %c1_126 = arith.constant 1 : index
    %236 = memref.load %arg2[%c5_125, %c1_126] : memref<8x4xf32, #tpu.memory_space<smem>>
    %237 = vector.broadcast %236 : f32 to vector<8x128xf32>
    %238 = arith.mulf %237, %25 : vector<8x128xf32>
    %239 = arith.addf %235, %238 : vector<8x128xf32>
    %c5_127 = arith.constant 5 : index
    %c2_128 = arith.constant 2 : index
    %240 = memref.load %arg2[%c5_127, %c2_128] : memref<8x4xf32, #tpu.memory_space<smem>>
    %241 = vector.broadcast %240 : f32 to vector<8x128xf32>
    %242 = arith.mulf %241, %38 : vector<8x128xf32>
    %243 = arith.addf %239, %242 : vector<8x128xf32>
    %c5_129 = arith.constant 5 : index
    %c3_130 = arith.constant 3 : index
    %244 = memref.load %arg2[%c5_129, %c3_130] : memref<8x4xf32, #tpu.memory_space<smem>>
    %245 = vector.broadcast %244 : f32 to vector<8x128xf32>
    %246 = arith.mulf %245, %51 : vector<8x128xf32>
    %247 = arith.addf %243, %246 : vector<8x128xf32>
    %c5_131 = arith.constant 5 : index
    %248 = memref.load %arg3[%c5_131] : memref<8xf32, #tpu.memory_space<smem>>
    %249 = vector.broadcast %248 : f32 to vector<8x128xf32>
    %250 = arith.addf %247, %249 : vector<8x128xf32>
    %cst_132 = arith.constant 1.000000e-01 : f32
    %251 = vector.broadcast %cst_132 : f32 to vector<8x128xf32>
    %252 = arith.mulf %251, %250 : vector<8x128xf32>
    %253 = arith.maximumf %250, %252 : vector<8x128xf32>
    %c0_133 = arith.constant 0 : index
    %c5_134 = arith.constant 5 : index
    %254 = memref.load %arg4[%c0_133, %c5_134] : memref<4x8xf32, #tpu.memory_space<smem>>
    %255 = vector.broadcast %254 : f32 to vector<8x128xf32>
    %256 = arith.mulf %255, %253 : vector<8x128xf32>
    %257 = arith.addf %220, %256 : vector<8x128xf32>
    %c1_135 = arith.constant 1 : index
    %c5_136 = arith.constant 5 : index
    %258 = memref.load %arg4[%c1_135, %c5_136] : memref<4x8xf32, #tpu.memory_space<smem>>
    %259 = vector.broadcast %258 : f32 to vector<8x128xf32>
    %260 = arith.mulf %259, %253 : vector<8x128xf32>
    %261 = arith.addf %224, %260 : vector<8x128xf32>
    %c2_137 = arith.constant 2 : index
    %c5_138 = arith.constant 5 : index
    %262 = memref.load %arg4[%c2_137, %c5_138] : memref<4x8xf32, #tpu.memory_space<smem>>
    %263 = vector.broadcast %262 : f32 to vector<8x128xf32>
    %264 = arith.mulf %263, %253 : vector<8x128xf32>
    %265 = arith.addf %228, %264 : vector<8x128xf32>
    %c3_139 = arith.constant 3 : index
    %c5_140 = arith.constant 5 : index
    %266 = memref.load %arg4[%c3_139, %c5_140] : memref<4x8xf32, #tpu.memory_space<smem>>
    %267 = vector.broadcast %266 : f32 to vector<8x128xf32>
    %268 = arith.mulf %267, %253 : vector<8x128xf32>
    %269 = arith.addf %232, %268 : vector<8x128xf32>
    %c6 = arith.constant 6 : index
    %c0_141 = arith.constant 0 : index
    %270 = memref.load %arg2[%c6, %c0_141] : memref<8x4xf32, #tpu.memory_space<smem>>
    %271 = vector.broadcast %270 : f32 to vector<8x128xf32>
    %272 = arith.mulf %271, %12 : vector<8x128xf32>
    %c6_142 = arith.constant 6 : index
    %c1_143 = arith.constant 1 : index
    %273 = memref.load %arg2[%c6_142, %c1_143] : memref<8x4xf32, #tpu.memory_space<smem>>
    %274 = vector.broadcast %273 : f32 to vector<8x128xf32>
    %275 = arith.mulf %274, %25 : vector<8x128xf32>
    %276 = arith.addf %272, %275 : vector<8x128xf32>
    %c6_144 = arith.constant 6 : index
    %c2_145 = arith.constant 2 : index
    %277 = memref.load %arg2[%c6_144, %c2_145] : memref<8x4xf32, #tpu.memory_space<smem>>
    %278 = vector.broadcast %277 : f32 to vector<8x128xf32>
    %279 = arith.mulf %278, %38 : vector<8x128xf32>
    %280 = arith.addf %276, %279 : vector<8x128xf32>
    %c6_146 = arith.constant 6 : index
    %c3_147 = arith.constant 3 : index
    %281 = memref.load %arg2[%c6_146, %c3_147] : memref<8x4xf32, #tpu.memory_space<smem>>
    %282 = vector.broadcast %281 : f32 to vector<8x128xf32>
    %283 = arith.mulf %282, %51 : vector<8x128xf32>
    %284 = arith.addf %280, %283 : vector<8x128xf32>
    %c6_148 = arith.constant 6 : index
    %285 = memref.load %arg3[%c6_148] : memref<8xf32, #tpu.memory_space<smem>>
    %286 = vector.broadcast %285 : f32 to vector<8x128xf32>
    %287 = arith.addf %284, %286 : vector<8x128xf32>
    %cst_149 = arith.constant 1.000000e-01 : f32
    %288 = vector.broadcast %cst_149 : f32 to vector<8x128xf32>
    %289 = arith.mulf %288, %287 : vector<8x128xf32>
    %290 = arith.maximumf %287, %289 : vector<8x128xf32>
    %c0_150 = arith.constant 0 : index
    %c6_151 = arith.constant 6 : index
    %291 = memref.load %arg4[%c0_150, %c6_151] : memref<4x8xf32, #tpu.memory_space<smem>>
    %292 = vector.broadcast %291 : f32 to vector<8x128xf32>
    %293 = arith.mulf %292, %290 : vector<8x128xf32>
    %294 = arith.addf %257, %293 : vector<8x128xf32>
    %c1_152 = arith.constant 1 : index
    %c6_153 = arith.constant 6 : index
    %295 = memref.load %arg4[%c1_152, %c6_153] : memref<4x8xf32, #tpu.memory_space<smem>>
    %296 = vector.broadcast %295 : f32 to vector<8x128xf32>
    %297 = arith.mulf %296, %290 : vector<8x128xf32>
    %298 = arith.addf %261, %297 : vector<8x128xf32>
    %c2_154 = arith.constant 2 : index
    %c6_155 = arith.constant 6 : index
    %299 = memref.load %arg4[%c2_154, %c6_155] : memref<4x8xf32, #tpu.memory_space<smem>>
    %300 = vector.broadcast %299 : f32 to vector<8x128xf32>
    %301 = arith.mulf %300, %290 : vector<8x128xf32>
    %302 = arith.addf %265, %301 : vector<8x128xf32>
    %c3_156 = arith.constant 3 : index
    %c6_157 = arith.constant 6 : index
    %303 = memref.load %arg4[%c3_156, %c6_157] : memref<4x8xf32, #tpu.memory_space<smem>>
    %304 = vector.broadcast %303 : f32 to vector<8x128xf32>
    %305 = arith.mulf %304, %290 : vector<8x128xf32>
    %306 = arith.addf %269, %305 : vector<8x128xf32>
    %c7 = arith.constant 7 : index
    %c0_158 = arith.constant 0 : index
    %307 = memref.load %arg2[%c7, %c0_158] : memref<8x4xf32, #tpu.memory_space<smem>>
    %308 = vector.broadcast %307 : f32 to vector<8x128xf32>
    %309 = arith.mulf %308, %12 : vector<8x128xf32>
    %c7_159 = arith.constant 7 : index
    %c1_160 = arith.constant 1 : index
    %310 = memref.load %arg2[%c7_159, %c1_160] : memref<8x4xf32, #tpu.memory_space<smem>>
    %311 = vector.broadcast %310 : f32 to vector<8x128xf32>
    %312 = arith.mulf %311, %25 : vector<8x128xf32>
    %313 = arith.addf %309, %312 : vector<8x128xf32>
    %c7_161 = arith.constant 7 : index
    %c2_162 = arith.constant 2 : index
    %314 = memref.load %arg2[%c7_161, %c2_162] : memref<8x4xf32, #tpu.memory_space<smem>>
    %315 = vector.broadcast %314 : f32 to vector<8x128xf32>
    %316 = arith.mulf %315, %38 : vector<8x128xf32>
    %317 = arith.addf %313, %316 : vector<8x128xf32>
    %c7_163 = arith.constant 7 : index
    %c3_164 = arith.constant 3 : index
    %318 = memref.load %arg2[%c7_163, %c3_164] : memref<8x4xf32, #tpu.memory_space<smem>>
    %319 = vector.broadcast %318 : f32 to vector<8x128xf32>
    %320 = arith.mulf %319, %51 : vector<8x128xf32>
    %321 = arith.addf %317, %320 : vector<8x128xf32>
    %c7_165 = arith.constant 7 : index
    %322 = memref.load %arg3[%c7_165] : memref<8xf32, #tpu.memory_space<smem>>
    %323 = vector.broadcast %322 : f32 to vector<8x128xf32>
    %324 = arith.addf %321, %323 : vector<8x128xf32>
    %cst_166 = arith.constant 1.000000e-01 : f32
    %325 = vector.broadcast %cst_166 : f32 to vector<8x128xf32>
    %326 = arith.mulf %325, %324 : vector<8x128xf32>
    %327 = arith.maximumf %324, %326 : vector<8x128xf32>
    %c0_167 = arith.constant 0 : index
    %c7_168 = arith.constant 7 : index
    %328 = memref.load %arg4[%c0_167, %c7_168] : memref<4x8xf32, #tpu.memory_space<smem>>
    %329 = vector.broadcast %328 : f32 to vector<8x128xf32>
    %330 = arith.mulf %329, %327 : vector<8x128xf32>
    %331 = arith.addf %294, %330 : vector<8x128xf32>
    %c1_169 = arith.constant 1 : index
    %c7_170 = arith.constant 7 : index
    %332 = memref.load %arg4[%c1_169, %c7_170] : memref<4x8xf32, #tpu.memory_space<smem>>
    %333 = vector.broadcast %332 : f32 to vector<8x128xf32>
    %334 = arith.mulf %333, %327 : vector<8x128xf32>
    %335 = arith.addf %298, %334 : vector<8x128xf32>
    %c2_171 = arith.constant 2 : index
    %c7_172 = arith.constant 7 : index
    %336 = memref.load %arg4[%c2_171, %c7_172] : memref<4x8xf32, #tpu.memory_space<smem>>
    %337 = vector.broadcast %336 : f32 to vector<8x128xf32>
    %338 = arith.mulf %337, %327 : vector<8x128xf32>
    %339 = arith.addf %302, %338 : vector<8x128xf32>
    %c3_173 = arith.constant 3 : index
    %c7_174 = arith.constant 7 : index
    %340 = memref.load %arg4[%c3_173, %c7_174] : memref<4x8xf32, #tpu.memory_space<smem>>
    %341 = vector.broadcast %340 : f32 to vector<8x128xf32>
    %342 = arith.mulf %341, %327 : vector<8x128xf32>
    %343 = arith.addf %306, %342 : vector<8x128xf32>
    %c0_175 = arith.constant 0 : index
    %344 = memref.load %arg5[%c0_175] : memref<4xf32, #tpu.memory_space<smem>>
    %345 = vector.broadcast %344 : f32 to vector<8x128xf32>
    %346 = arith.addf %331, %345 : vector<8x128xf32>
    %347 = arith.mulf %346, %11 : vector<8x128xf32>
    %c0_176 = arith.constant 0 : index
    %c0_177 = arith.constant 0 : index
    %c0_178 = arith.constant 0 : index
    %c0_179 = arith.constant 0 : index
    %348 = vector.load %arg6[%c0_176, %c0_177, %c0_178, %c0_179] : memref<1x4x8x128xf32, #tpu.memory_space<vmem>>, vector<1x1x8x128xf32>
    %349 = vector.shape_cast %348 : vector<1x1x8x128xf32> to vector<8x128xf32>
    %c0_180 = arith.constant 0 : index
    %c0_181 = arith.constant 0 : index
    %c0_182 = arith.constant 0 : index
    %c0_183 = arith.constant 0 : index
    %350 = vector.load %arg7[%c0_180, %c0_181, %c0_182, %c0_183] : memref<1x4x8x128xf32, #tpu.memory_space<vmem>>, vector<1x1x8x128xf32>
    %351 = vector.shape_cast %350 : vector<1x1x8x128xf32> to vector<8x128xf32>
    %352 = arith.mulf %349, %347 : vector<8x128xf32>
    %353 = arith.select %8, %352, %346 : vector<8x128xi1>, vector<8x128xf32>
    %c0_184 = arith.constant 0 : index
    %c0_185 = arith.constant 0 : index
    %c0_186 = arith.constant 0 : index
    %c0_187 = arith.constant 0 : index
    %354 = vector.load %arg8[%c0_184, %c0_185, %c0_186, %c0_187] : memref<1x4x8x128xf32, #tpu.memory_space<vmem>>, vector<1x1x8x128xf32>
    %355 = vector.shape_cast %354 : vector<1x1x8x128xf32> to vector<8x128xf32>
    %356 = vector.shape_cast %353 : vector<8x128xf32> to vector<1x1x8x128xf32>
    tpu.vector_store %arg8[%c0_184, %c0_185, %c0_186, %c0_187], %356 {strides = array<i32>} : memref<1x4x8x128xf32, #tpu.memory_space<vmem>>, vector<1x1x8x128xf32>,
    %357 = arith.mulf %351, %347 : vector<8x128xf32>
    %c0_188 = arith.constant 0 : index
    %c0_189 = arith.constant 0 : index
    %c0_190 = arith.constant 0 : index
    %c0_191 = arith.constant 0 : index
    %358 = vector.load %arg9[%c0_188, %c0_189, %c0_190, %c0_191] : memref<1x4x8x128xf32, #tpu.memory_space<vmem>>, vector<1x1x8x128xf32>
    %359 = vector.shape_cast %358 : vector<1x1x8x128xf32> to vector<8x128xf32>
    %360 = vector.shape_cast %357 : vector<8x128xf32> to vector<1x1x8x128xf32>
    tpu.vector_store %arg9[%c0_188, %c0_189, %c0_190, %c0_191], %360 {strides = array<i32>} : memref<1x4x8x128xf32, #tpu.memory_space<vmem>>, vector<1x1x8x128xf32>,
    %c1_192 = arith.constant 1 : index
    %361 = memref.load %arg5[%c1_192] : memref<4xf32, #tpu.memory_space<smem>>
    %362 = vector.broadcast %361 : f32 to vector<8x128xf32>
    %363 = arith.addf %335, %362 : vector<8x128xf32>
    %364 = arith.mulf %363, %24 : vector<8x128xf32>
    %c0_193 = arith.constant 0 : index
    %c1_194 = arith.constant 1 : index
    %c0_195 = arith.constant 0 : index
    %c0_196 = arith.constant 0 : index
    %365 = vector.load %arg6[%c0_193, %c1_194, %c0_195, %c0_196] : memref<1x4x8x128xf32, #tpu.memory_space<vmem>>, vector<1x1x8x128xf32>
    %366 = vector.shape_cast %365 : vector<1x1x8x128xf32> to vector<8x128xf32>
    %c0_197 = arith.constant 0 : index
    %c1_198 = arith.constant 1 : index
    %c0_199 = arith.constant 0 : index
    %c0_200 = arith.constant 0 : index
    %367 = vector.load %arg7[%c0_197, %c1_198, %c0_199, %c0_200] : memref<1x4x8x128xf32, #tpu.memory_space<vmem>>, vector<1x1x8x128xf32>
    %368 = vector.shape_cast %367 : vector<1x1x8x128xf32> to vector<8x128xf32>
    %369 = arith.mulf %366, %364 : vector<8x128xf32>
    %370 = arith.select %21, %369, %363 : vector<8x128xi1>, vector<8x128xf32>
    %c0_201 = arith.constant 0 : index
    %c1_202 = arith.constant 1 : index
    %c0_203 = arith.constant 0 : index
    %c0_204 = arith.constant 0 : index
    %371 = vector.load %arg8[%c0_201, %c1_202, %c0_203, %c0_204] : memref<1x4x8x128xf32, #tpu.memory_space<vmem>>, vector<1x1x8x128xf32>
    %372 = vector.shape_cast %371 : vector<1x1x8x128xf32> to vector<8x128xf32>
    %373 = vector.shape_cast %370 : vector<8x128xf32> to vector<1x1x8x128xf32>
    tpu.vector_store %arg8[%c0_201, %c1_202, %c0_203, %c0_204], %373 {strides = array<i32>} : memref<1x4x8x128xf32, #tpu.memory_space<vmem>>, vector<1x1x8x128xf32>,
    %374 = arith.mulf %368, %364 : vector<8x128xf32>
    %c0_205 = arith.constant 0 : index
    %c1_206 = arith.constant 1 : index
    %c0_207 = arith.constant 0 : index
    %c0_208 = arith.constant 0 : index
    %375 = vector.load %arg9[%c0_205, %c1_206, %c0_207, %c0_208] : memref<1x4x8x128xf32, #tpu.memory_space<vmem>>, vector<1x1x8x128xf32>
    %376 = vector.shape_cast %375 : vector<1x1x8x128xf32> to vector<8x128xf32>
    %377 = vector.shape_cast %374 : vector<8x128xf32> to vector<1x1x8x128xf32>
    tpu.vector_store %arg9[%c0_205, %c1_206, %c0_207, %c0_208], %377 {strides = array<i32>} : memref<1x4x8x128xf32, #tpu.memory_space<vmem>>, vector<1x1x8x128xf32>,
    %c2_209 = arith.constant 2 : index
    %378 = memref.load %arg5[%c2_209] : memref<4xf32, #tpu.memory_space<smem>>
    %379 = vector.broadcast %378 : f32 to vector<8x128xf32>
    %380 = arith.addf %339, %379 : vector<8x128xf32>
    %381 = arith.mulf %380, %37 : vector<8x128xf32>
    %c0_210 = arith.constant 0 : index
    %c2_211 = arith.constant 2 : index
    %c0_212 = arith.constant 0 : index
    %c0_213 = arith.constant 0 : index
    %382 = vector.load %arg6[%c0_210, %c2_211, %c0_212, %c0_213] : memref<1x4x8x128xf32, #tpu.memory_space<vmem>>, vector<1x1x8x128xf32>
    %383 = vector.shape_cast %382 : vector<1x1x8x128xf32> to vector<8x128xf32>
    %c0_214 = arith.constant 0 : index
    %c2_215 = arith.constant 2 : index
    %c0_216 = arith.constant 0 : index
    %c0_217 = arith.constant 0 : index
    %384 = vector.load %arg7[%c0_214, %c2_215, %c0_216, %c0_217] : memref<1x4x8x128xf32, #tpu.memory_space<vmem>>, vector<1x1x8x128xf32>
    %385 = vector.shape_cast %384 : vector<1x1x8x128xf32> to vector<8x128xf32>
    %386 = arith.mulf %383, %381 : vector<8x128xf32>
    %387 = arith.select %34, %386, %380 : vector<8x128xi1>, vector<8x128xf32>
    %c0_218 = arith.constant 0 : index
    %c2_219 = arith.constant 2 : index
    %c0_220 = arith.constant 0 : index
    %c0_221 = arith.constant 0 : index
    %388 = vector.load %arg8[%c0_218, %c2_219, %c0_220, %c0_221] : memref<1x4x8x128xf32, #tpu.memory_space<vmem>>, vector<1x1x8x128xf32>
    %389 = vector.shape_cast %388 : vector<1x1x8x128xf32> to vector<8x128xf32>
    %390 = vector.shape_cast %387 : vector<8x128xf32> to vector<1x1x8x128xf32>
    tpu.vector_store %arg8[%c0_218, %c2_219, %c0_220, %c0_221], %390 {strides = array<i32>} : memref<1x4x8x128xf32, #tpu.memory_space<vmem>>, vector<1x1x8x128xf32>,
    %391 = arith.mulf %385, %381 : vector<8x128xf32>
    %c0_222 = arith.constant 0 : index
    %c2_223 = arith.constant 2 : index
    %c0_224 = arith.constant 0 : index
    %c0_225 = arith.constant 0 : index
    %392 = vector.load %arg9[%c0_222, %c2_223, %c0_224, %c0_225] : memref<1x4x8x128xf32, #tpu.memory_space<vmem>>, vector<1x1x8x128xf32>
    %393 = vector.shape_cast %392 : vector<1x1x8x128xf32> to vector<8x128xf32>
    %394 = vector.shape_cast %391 : vector<8x128xf32> to vector<1x1x8x128xf32>
    tpu.vector_store %arg9[%c0_222, %c2_223, %c0_224, %c0_225], %394 {strides = array<i32>} : memref<1x4x8x128xf32, #tpu.memory_space<vmem>>, vector<1x1x8x128xf32>,
    %c3_226 = arith.constant 3 : index
    %395 = memref.load %arg5[%c3_226] : memref<4xf32, #tpu.memory_space<smem>>
    %396 = vector.broadcast %395 : f32 to vector<8x128xf32>
    %397 = arith.addf %343, %396 : vector<8x128xf32>
    %398 = arith.mulf %397, %50 : vector<8x128xf32>
    %c0_227 = arith.constant 0 : index
    %c3_228 = arith.constant 3 : index
    %c0_229 = arith.constant 0 : index
    %c0_230 = arith.constant 0 : index
    %399 = vector.load %arg6[%c0_227, %c3_228, %c0_229, %c0_230] : memref<1x4x8x128xf32, #tpu.memory_space<vmem>>, vector<1x1x8x128xf32>
    %400 = vector.shape_cast %399 : vector<1x1x8x128xf32> to vector<8x128xf32>
    %c0_231 = arith.constant 0 : index
    %c3_232 = arith.constant 3 : index
    %c0_233 = arith.constant 0 : index
    %c0_234 = arith.constant 0 : index
    %401 = vector.load %arg7[%c0_231, %c3_232, %c0_233, %c0_234] : memref<1x4x8x128xf32, #tpu.memory_space<vmem>>, vector<1x1x8x128xf32>
    %402 = vector.shape_cast %401 : vector<1x1x8x128xf32> to vector<8x128xf32>
    %403 = arith.mulf %400, %398 : vector<8x128xf32>
    %404 = arith.select %47, %403, %397 : vector<8x128xi1>, vector<8x128xf32>
    %c0_235 = arith.constant 0 : index
    %c3_236 = arith.constant 3 : index
    %c0_237 = arith.constant 0 : index
    %c0_238 = arith.constant 0 : index
    %405 = vector.load %arg8[%c0_235, %c3_236, %c0_237, %c0_238] : memref<1x4x8x128xf32, #tpu.memory_space<vmem>>, vector<1x1x8x128xf32>
    %406 = vector.shape_cast %405 : vector<1x1x8x128xf32> to vector<8x128xf32>
    %407 = vector.shape_cast %404 : vector<8x128xf32> to vector<1x1x8x128xf32>
    tpu.vector_store %arg8[%c0_235, %c3_236, %c0_237, %c0_238], %407 {strides = array<i32>} : memref<1x4x8x128xf32, #tpu.memory_space<vmem>>, vector<1x1x8x128xf32>,
    %408 = arith.mulf %402, %398 : vector<8x128xf32>
    %c0_239 = arith.constant 0 : index
    %c3_240 = arith.constant 3 : index
    %c0_241 = arith.constant 0 : index
    %c0_242 = arith.constant 0 : index
    %409 = vector.load %arg9[%c0_239, %c3_240, %c0_241, %c0_242] : memref<1x4x8x128xf32, #tpu.memory_space<vmem>>, vector<1x1x8x128xf32>
    %410 = vector.shape_cast %409 : vector<1x1x8x128xf32> to vector<8x128xf32>
    %411 = vector.shape_cast %408 : vector<8x128xf32> to vector<1x1x8x128xf32>
    tpu.vector_store %arg9[%c0_239, %c3_240, %c0_241, %c0_242], %411 {strides = array<i32>} : memref<1x4x8x128xf32, #tpu.memory_space<vmem>>, vector<1x1x8x128xf32>,
    return
  }
  func.func @transform_0(%arg0: i32, %arg1: i32, %arg2: memref<8x4xf32, #tpu.memory_space<smem>>, %arg3: memref<8xf32, #tpu.memory_space<smem>>, %arg4: memref<4x8xf32, #tpu.memory_space<smem>>, %arg5: memref<4xf32, #tpu.memory_space<smem>>) -> (i32, i32, i32, i32) {
    %c0_i32 = arith.constant 0 : i32
    %c0_i32_0 = arith.constant 0 : i32
    %c0_i32_1 = arith.constant 0 : i32
    return %arg0, %c0_i32, %arg1, %c0_i32_0 : i32, i32, i32, i32
  }
  func.func @transform_1(%arg0: i32, %arg1: i32, %arg2: memref<8x4xf32, #tpu.memory_space<smem>>, %arg3: memref<8xf32, #tpu.memory_space<smem>>, %arg4: memref<4x8xf32, #tpu.memory_space<smem>>, %arg5: memref<4xf32, #tpu.memory_space<smem>>) -> (i32, i32, i32, i32) {
    %c0_i32 = arith.constant 0 : i32
    %c0_i32_0 = arith.constant 0 : i32
    %c0_i32_1 = arith.constant 0 : i32
    return %arg0, %c0_i32, %arg1, %c0_i32_0 : i32, i32, i32, i32
  }
  func.func @transform_2(%arg0: i32, %arg1: i32, %arg2: memref<8x4xf32, #tpu.memory_space<smem>>, %arg3: memref<8xf32, #tpu.memory_space<smem>>, %arg4: memref<4x8xf32, #tpu.memory_space<smem>>, %arg5: memref<4xf32, #tpu.memory_space<smem>>) -> (i32, i32, i32, i32) {
    %c0_i32 = arith.constant 0 : i32
    %c0_i32_0 = arith.constant 0 : i32
    %c0_i32_1 = arith.constant 0 : i32
    return %arg0, %c0_i32, %arg1, %c0_i32_0 : i32, i32, i32, i32
  }
  func.func @transform_3(%arg0: i32, %arg1: i32, %arg2: memref<8x4xf32, #tpu.memory_space<smem>>, %arg3: memref<8xf32, #tpu.memory_space<smem>>, %arg4: memref<4x8xf32, #tpu.memory_space<smem>>, %arg5: memref<4xf32, #tpu.memory_space<smem>>) -> (i32, i32, i32, i32) {
    %c0_i32 = arith.constant 0 : i32
    %c0_i32_0 = arith.constant 0 : i32
    %c0_i32_1 = arith.constant 0 : i32
    return %arg0, %c0_i32, %arg1, %c0_i32_0 : i32, i32, i32, i32
  }
}

</mosaic_0001>

<llo_original>
// kernel: reverse.0
$region0: #{reverse.0}
  %s0 = inlined_call_operand.vmem [shape: f32[2,4,16,7], index: 0, kind: input, shape index: {}]
  %s1 = inlined_call_operand.vmem [shape: f32[2,4,16,7], index: 1, kind: output, shape index: {}]
  $region1: #{reverse.0} parent=0
    #allocation0 [shape = 'u8[65536]{0}', space=vmem, size = 0x10000, scoped, tag = 'operand span for operand 0']
    #allocation1 [shape = 'u8[32768]{0}', space=vmem, size = 0x8000, scoped, tag = 'operand span for operand 1']
    %s2 = scalar_lea.vmem [#allocation0], 8
    // Predicated region
    $region2: #{reverse.0} parent=1 // pred_check
      _
    $region3: #{reverse.0} parent=1 // pred_check_branch
      %4 = sbr.rel (0) target = $region5
    $region4: #{reverse.0} parent=1 // pred_region
      // Predicated region
      $region6: #{reverse.0} parent=4 // pred_check
        _
      $region7: #{reverse.0} parent=4 // pred_check_branch
        %6 = sbr.rel (0) target = $region9
      $region8: #{reverse.0} parent=4 // pred_region
        // Predicated region
        $region21: #{reverse.0} parent=8 // pred_check
          _
        $region22: #{reverse.0} parent=8 // pred_check_branch
          %35 = sbr.rel (0) target = $region24
        $region23: #{reverse.0} parent=8 // pred_region
          loop: start=0, step=1, limit=1
          $region25: #{reverse.0} parent=23 // loop_pre_header
            _
          $region26: #{reverse.0} parent=23 // loop_header
            %s37 = sphi 0, %s41
            %p38 = scmp.ge.s32.totalorder %s37, 1
            %s42 = sphi %s0, %s0
            %s43 = sphi %s2, %s2
          $region27: #{reverse.0} parent=23 // loop_header_branch
            %40 = sbr.rel (%p38) target = $region31
          $region28: #{reverse.0} parent=23 // loop_body
            %v44 = vld [vmem:[%s42] sm:$0xff]
            %45 = vst [vmem:[%s43] sm:$0xff] %v44
            %v46 = vld [vmem:[%s42 + $0x8] sm:$0xff]
            %47 = vst [vmem:[%s43 + $0x10] sm:$0xff] %v46
            %v48 = vld [vmem:[%s42 + $0x10] sm:$0xff]
            %49 = vst [vmem:[%s43 + $0x20] sm:$0xff] %v48
            %v50 = vld [vmem:[%s42 + $0x18] sm:$0xff]
            %51 = vst [vmem:[%s43 + $0x30] sm:$0xff] %v50
            %v52 = vld [vmem:[%s42 + $0x20] sm:$0xff]
            %53 = vst [vmem:[%s43 + $0x40] sm:$0xff] %v52
            %v54 = vld [vmem:[%s42 + $0x28] sm:$0xff]
            %55 = vst [vmem:[%s43 + $0x50] sm:$0xff] %v54
            %v56 = vld [vmem:[%s42 + $0x30] sm:$0xff]
            %57 = vst [vmem:[%s43 + $0x60] sm:$0xff] %v56
            %v58 = vld [vmem:[%s42 + $0x38] sm:$0xff]
            %59 = vst [vmem:[%s43 + $0x70] sm:$0xff] %v58
          $region29: #{reverse.0} parent=23 // loop_footer
            %s41 = sadd.s32 1, %s37
          $region30: #{reverse.0} parent=23 // loop_footer_branch
            %36 = sbr.rel target = $region26
          $region31: #{reverse.0} parent=23 // loop_exit
            _
        $region24: #{reverse.0} parent=8 // pred_fallthru
          _
        // Predicated region
        $region32: #{reverse.0} parent=8 // pred_check
          _
        $region33: #{reverse.0} parent=8 // pred_check_branch
          %61 = sbr.rel target = $region35
        $region34: #{reverse.0} parent=8 // pred_region
          _
        $region35: #{reverse.0} parent=8 // pred_fallthru
          _
      $region9: #{reverse.0} parent=4 // pred_fallthru
        _
      // Predicated region
      $region10: #{reverse.0} parent=4 // pred_check
        _
      $region11: #{reverse.0} parent=4 // pred_check_branch
        %8 = sbr.rel target = $region13
      $region12: #{reverse.0} parent=4 // pred_region
        loop: start=0, step=1, limit=1
        $region14: #{reverse.0} parent=12 // loop_pre_header
          _
        $region15: #{reverse.0} parent=12 // loop_header
          %s11 = sphi 0, %s15
          %p12 = scmp.ge.s32.totalorder %s11, 1
          %s16 = sphi %s0, %s0
          %s17 = sphi %s2, %s2
        $region16: #{reverse.0} parent=12 // loop_header_branch
          %14 = sbr.rel (%p12) target = $region20
        $region17: #{reverse.0} parent=12 // loop_body
          %v18 = vld [vmem:[%s16] sm:$0xff]
          %19 = vst [vmem:[%s17] sm:$0xff] %v18
          %v20 = vld [vmem:[%s16 + $0x8] sm:$0xff]
          %21 = vst [vmem:[%s17 + $0x10] sm:$0xff] %v20
          %v22 = vld [vmem:[%s16 + $0x10] sm:$0xff]
          %23 = vst [vmem:[%s17 + $0x20] sm:$0xff] %v22
          %v24 = vld [vmem:[%s16 + $0x18] sm:$0xff]
          %25 = vst [vmem:[%s17 + $0x30] sm:$0xff] %v24
          %v26 = vld [vmem:[%s16 + $0x20] sm:$0xff]
          %27 = vst [vmem:[%s17 + $0x40] sm:$0xff] %v26
          %v28 = vld [vmem:[%s16 + $0x28] sm:$0xff]
          %29 = vst [vmem:[%s17 + $0x50] sm:$0xff] %v28
          %v30 = vld [vmem:[%s16 + $0x30] sm:$0xff]
          %31 = vst [vmem:[%s17 + $0x60] sm:$0xff] %v30
          %v32 = vld [vmem:[%s16 + $0x38] sm:$0xff]
          %33 = vst [vmem:[%s17 + $0x70] sm:$0xff] %v32
        $region18: #{reverse.0} parent=12 // loop_footer
          %s15 = sadd.s32 1, %s11
        $region19: #{reverse.0} parent=12 // loop_footer_branch
          %10 = sbr.rel target = $region15
        $region20: #{reverse.0} parent=12 // loop_exit
          _
      $region13: #{reverse.0} parent=4 // pred_fallthru
        _
    $region5: #{reverse.0} parent=1 // pred_fallthru
      _
    %62 = vnop
    %s63 = scalar_lea.vmem [#allocation0], 7
    %v64 = vld [vmem:[%s63] ss:$-1 sm:$0xff]
    %v65 = vrot.slane %v64, 1
    %66 = vst [vmem:[#allocation1] sm:$0xff] %v65
    %s67 = scalar_lea.vmem [#allocation0], 8
    %s68 = scalar_lea.vmem %s67, 7 [#allocation0]
    %v69 = vld [vmem:[%s68] ss:$-1 sm:$0xff]
    %v70 = vrot.slane %v69, 1
    %v71 = vlaneseq
    %v72 = vshrl.u32 %v71, 7
    %vm73 = vcmp.lt.s32.totalorder %v72, 7
    %74 = vst.msk [vmem:[#allocation1] sm:$0xff] %vm73, %v70
    %s75 = scalar_lea.vmem [#allocation1], 8
    %s76 = scalar_lea.vmem [#allocation0], 16
    %s77 = scalar_lea.vmem %s76, 7 [#allocation0]
    %v78 = vld [vmem:[%s77] ss:$-1 sm:$0xff]
    %v79 = vrot.slane %v78, 1
    %80 = vst [vmem:[%s75] sm:$0xff] %v79
    %s81 = scalar_lea.vmem %s76, 8 [#allocation0]
    %s82 = scalar_lea.vmem %s81, 7 [#allocation0]
    %v83 = vld [vmem:[%s82] ss:$-1 sm:$0xff]
    %v84 = vrot.slane %v83, 1
    %v85 = vlaneseq
    %v86 = vshrl.u32 %v85, 7
    %vm87 = vcmp.lt.s32.totalorder %v86, 7
    %88 = vst.msk [vmem:[%s75] sm:$0xff] %vm87, %v84
    %s89 = scalar_lea.vmem [#allocation1], 16
    %s90 = scalar_lea.vmem [#allocation0], 32
    %s91 = scalar_lea.vmem %s90, 7 [#allocation0]
    %v92 = vld [vmem:[%s91] ss:$-1 sm:$0xff]
    %v93 = vrot.slane %v92, 1
    %94 = vst [vmem:[%s89] sm:$0xff] %v93
    %s95 = scalar_lea.vmem %s90, 8 [#allocation0]
    %s96 = scalar_lea.vmem %s95, 7 [#allocation0]
    %v97 = vld [vmem:[%s96] ss:$-1 sm:$0xff]
    %v98 = vrot.slane %v97, 1
    %v99 = vlaneseq
    %v100 = vshrl.u32 %v99, 7
    %vm101 = vcmp.lt.s32.totalorder %v100, 7
    %102 = vst.msk [vmem:[%s89] sm:$0xff] %vm101, %v98
    %s103 = scalar_lea.vmem [#allocation1], 24
    %s104 = scalar_lea.vmem [#allocation0], 48
    %s105 = scalar_lea.vmem %s104, 7 [#allocation0]
    %v106 = vld [vmem:[%s105] ss:$-1 sm:$0xff]
    %v107 = vrot.slane %v106, 1
    %108 = vst [vmem:[%s103] sm:$0xff] %v107
    %s109 = scalar_lea.vmem %s104, 8 [#allocation0]
    %s110 = scalar_lea.vmem %s109, 7 [#allocation0]
    %v111 = vld [vmem:[%s110] ss:$-1 sm:$0xff]
    %v112 = vrot.slane %v111, 1
    %v113 = vlaneseq
    %v114 = vshrl.u32 %v113, 7
    %vm115 = vcmp.lt.s32.totalorder %v114, 7
    %116 = vst.msk [vmem:[%s103] sm:$0xff] %vm115, %v112
    %s117 = scalar_lea.vmem [#allocation1], 32
    %s118 = scalar_lea.vmem [#allocation0], 64
    %s119 = scalar_lea.vmem %s118, 7 [#allocation0]
    %v120 = vld [vmem:[%s119] ss:$-1 sm:$0xff]
    %v121 = vrot.slane %v120, 1
    %122 = vst [vmem:[%s117] sm:$0xff] %v121
    %s123 = scalar_lea.vmem %s118, 8 [#allocation0]
    %s124 = scalar_lea.vmem %s123, 7 [#allocation0]
    %v125 = vld [vmem:[%s124] ss:$-1 sm:$0xff]
    %v126 = vrot.slane %v125, 1
    %v127 = vlaneseq
    %v128 = vshrl.u32 %v127, 7
    %vm129 = vcmp.lt.s32.totalorder %v128, 7
    %130 = vst.msk [vmem:[%s117] sm:$0xff] %vm129, %v126
    %s131 = scalar_lea.vmem [#allocation1], 40
    %s132 = scalar_lea.vmem [#allocation0], 80
    %s133 = scalar_lea.vmem %s132, 7 [#allocation0]
    %v134 = vld [vmem:[%s133] ss:$-1 sm:$0xff]
    %v135 = vrot.slane %v134, 1
    %136 = vst [vmem:[%s131] sm:$0xff] %v135
    %s137 = scalar_lea.vmem %s132, 8 [#allocation0]
    %s138 = scalar_lea.vmem %s137, 7 [#allocation0]
    %v139 = vld [vmem:[%s138] ss:$-1 sm:$0xff]
    %v140 = vrot.slane %v139, 1
    %v141 = vlaneseq
    %v142 = vshrl.u32 %v141, 7
    %vm143 = vcmp.lt.s32.totalorder %v142, 7
    %144 = vst.msk [vmem:[%s131] sm:$0xff] %vm143, %v140
    %s145 = scalar_lea.vmem [#allocation1], 48
    %s146 = scalar_lea.vmem [#allocation0], 96
    %s147 = scalar_lea.vmem %s146, 7 [#allocation0]
    %v148 = vld [vmem:[%s147] ss:$-1 sm:$0xff]
    %v149 = vrot.slane %v148, 1
    %150 = vst [vmem:[%s145] sm:$0xff] %v149
    %s151 = scalar_lea.vmem %s146, 8 [#allocation0]
    %s152 = scalar_lea.vmem %s151, 7 [#allocation0]
    %v153 = vld [vmem:[%s152] ss:$-1 sm:$0xff]
    %v154 = vrot.slane %v153, 1
    %v155 = vlaneseq
    %v156 = vshrl.u32 %v155, 7
    %vm157 = vcmp.lt.s32.totalorder %v156, 7
    %158 = vst.msk [vmem:[%s145] sm:$0xff] %vm157, %v154
    %s159 = scalar_lea.vmem [#allocation1], 56
    %s160 = scalar_lea.vmem [#allocation0], 112
    %s161 = scalar_lea.vmem %s160, 7 [#allocation0]
    %v162 = vld [vmem:[%s161] ss:$-1 sm:$0xff]
    %v163 = vrot.slane %v162, 1
    %164 = vst [vmem:[%s159] sm:$0xff] %v163
    %s165 = scalar_lea.vmem %s160, 8 [#allocation0]
    %s166 = scalar_lea.vmem %s165, 7 [#allocation0]
    %v167 = vld [vmem:[%s166] ss:$-1 sm:$0xff]
    %v168 = vrot.slane %v167, 1
    %v169 = vlaneseq
    %v170 = vshrl.u32 %v169, 7
    %vm171 = vcmp.lt.s32.totalorder %v170, 7
    %172 = vst.msk [vmem:[%s159] sm:$0xff] %vm171, %v168
    // Predicated region
    $region36: #{reverse.0} parent=1 // pred_check
      _
    $region37: #{reverse.0} parent=1 // pred_check_branch
      %174 = sbr.rel (0) target = $region39
    $region38: #{reverse.0} parent=1 // pred_region
      // Predicated region
      $region40: #{reverse.0} parent=38 // pred_check
        _
      $region41: #{reverse.0} parent=38 // pred_check_branch
        %176 = sbr.rel (0) target = $region43
      $region42: #{reverse.0} parent=38 // pred_region
        // Predicated region
        $region55: #{reverse.0} parent=42 // pred_check
          _
        $region56: #{reverse.0} parent=42 // pred_check_branch
          %205 = sbr.rel (0) target = $region58
        $region57: #{reverse.0} parent=42 // pred_region
          loop: start=0, step=1, limit=1
          $region59: #{reverse.0} parent=57 // loop_pre_header
            _
          $region60: #{reverse.0} parent=57 // loop_header
            %s207 = sphi 0, %s211
            %p208 = scmp.ge.s32.totalorder %s207, 1
            %s212 = sphi [#allocation1], [#allocation1]
            %s213 = sphi %s1, %s1
          $region61: #{reverse.0} parent=57 // loop_header_branch
            %210 = sbr.rel (%p208) target = $region65
          $region62: #{reverse.0} parent=57 // loop_body
            %v214 = vld [vmem:[%s212] sm:$0xff]
            %215 = vst [vmem:[%s213] sm:$0xff] %v214
            %v216 = vld [vmem:[%s212 + $0x8] sm:$0xff]
            %217 = vst [vmem:[%s213 + $0x8] sm:$0xff] %v216
            %v218 = vld [vmem:[%s212 + $0x10] sm:$0xff]
            %219 = vst [vmem:[%s213 + $0x10] sm:$0xff] %v218
            %v220 = vld [vmem:[%s212 + $0x18] sm:$0xff]
            %221 = vst [vmem:[%s213 + $0x18] sm:$0xff] %v220
            %v222 = vld [vmem:[%s212 + $0x20] sm:$0xff]
            %223 = vst [vmem:[%s213 + $0x20] sm:$0xff] %v222
            %v224 = vld [vmem:[%s212 + $0x28] sm:$0xff]
            %225 = vst [vmem:[%s213 + $0x28] sm:$0xff] %v224
            %v226 = vld [vmem:[%s212 + $0x30] sm:$0xff]
            %227 = vst [vmem:[%s213 + $0x30] sm:$0xff] %v226
            %v228 = vld [vmem:[%s212 + $0x38] sm:$0xff]
            %229 = vst [vmem:[%s213 + $0x38] sm:$0xff] %v228
          $region63: #{reverse.0} parent=57 // loop_footer
            %s211 = sadd.s32 1, %s207
          $region64: #{reverse.0} parent=57 // loop_footer_branch
            %206 = sbr.rel target = $region60
          $region65: #{reverse.0} parent=57 // loop_exit
            _
        $region58: #{reverse.0} parent=42 // pred_fallthru
          _
        // Predicated region
        $region66: #{reverse.0} parent=42 // pred_check
          _
        $region67: #{reverse.0} parent=42 // pred_check_branch
          %231 = sbr.rel target = $region69
        $region68: #{reverse.0} parent=42 // pred_region
          _
        $region69: #{reverse.0} parent=42 // pred_fallthru
          _
      $region43: #{reverse.0} parent=38 // pred_fallthru
        _
      // Predicated region
      $region44: #{reverse.0} parent=38 // pred_check
        _
      $region45: #{reverse.0} parent=38 // pred_check_branch
        %178 = sbr.rel target = $region47
      $region46: #{reverse.0} parent=38 // pred_region
        loop: start=0, step=1, limit=1
        $region48: #{reverse.0} parent=46 // loop_pre_header
          _
        $region49: #{reverse.0} parent=46 // loop_header
          %s181 = sphi 0, %s185
          %p182 = scmp.ge.s32.totalorder %s181, 1
          %s186 = sphi [#allocation1], [#allocation1]
          %s187 = sphi %s1, %s1
        $region50: #{reverse.0} parent=46 // loop_header_branch
          %184 = sbr.rel (%p182) target = $region54
        $region51: #{reverse.0} parent=46 // loop_body
          %v188 = vld [vmem:[%s186] sm:$0xff]
          %189 = vst [vmem:[%s187] sm:$0xff] %v188
          %v190 = vld [vmem:[%s186 + $0x8] sm:$0xff]
          %191 = vst [vmem:[%s187 + $0x8] sm:$0xff] %v190
          %v192 = vld [vmem:[%s186 + $0x10] sm:$0xff]
          %193 = vst [vmem:[%s187 + $0x10] sm:$0xff] %v192
          %v194 = vld [vmem:[%s186 + $0x18] sm:$0xff]
          %195 = vst [vmem:[%s187 + $0x18] sm:$0xff] %v194
          %v196 = vld [vmem:[%s186 + $0x20] sm:$0xff]
          %197 = vst [vmem:[%s187 + $0x20] sm:$0xff] %v196
          %v198 = vld [vmem:[%s186 + $0x28] sm:$0xff]
          %199 = vst [vmem:[%s187 + $0x28] sm:$0xff] %v198
          %v200 = vld [vmem:[%s186 + $0x30] sm:$0xff]
          %201 = vst [vmem:[%s187 + $0x30] sm:$0xff] %v200
          %v202 = vld [vmem:[%s186 + $0x38] sm:$0xff]
          %203 = vst [vmem:[%s187 + $0x38] sm:$0xff] %v202
        $region52: #{reverse.0} parent=46 // loop_footer
          %s185 = sadd.s32 1, %s181
        $region53: #{reverse.0} parent=46 // loop_footer_branch
          %180 = sbr.rel target = $region49
        $region54: #{reverse.0} parent=46 // loop_exit
          _
      $region47: #{reverse.0} parent=38 // pred_fallthru
        _
    $region39: #{reverse.0} parent=1 // pred_fallthru
      _
    %232 = vnop

// kernel: fremlp_forward.1
$region0: #{fremlp_forward.1}
  #allocation0 [shape = 'u32[]', space=smem, size = 0x4, offset = 0x4, fixed_abs, tag = 'smem constant byte address 0x4 - core index']
  #allocation1 [shape = 'u32[144,128]{1,0:T(1,128)}', space=vmem, size = 0x12000, scoped, tag = 'internal scratch']
  #allocation2 [shape = 's32[1]{0}', space=sflag, size = 0x4, scoped, tag = 'scoped memory for fremlp_forward.1']
  #allocation3 [shape = 'u8[4096]{0}', space=smem, size = 0x1000, scoped, tag = 'prefetched SMEM operand 0']
  #allocation4 [shape = 'u8[512]{0}', space=smem, size = 0x200, scoped, tag = 'prefetched SMEM operand 1']
  #allocation5 [shape = 'u8[2048]{0}', space=smem, size = 0x800, scoped, tag = 'prefetched SMEM operand 2']
  #allocation6 [shape = 'u8[512]{0}', space=smem, size = 0x200, scoped, tag = 'prefetched SMEM operand 3']
  %s0 = inlined_call_operand.vmem [shape: f32[8,4], index: 0, kind: input, shape index: {}]
  %s1 = inlined_call_operand.vmem [shape: f32[8], index: 1, kind: input, shape index: {}]
  %s2 = inlined_call_operand.vmem [shape: f32[4,8], index: 2, kind: input, shape index: {}]
  %s3 = inlined_call_operand.vmem [shape: f32[4], index: 3, kind: input, shape index: {}]
  %s4 = inlined_call_operand.vmem [shape: f32[2,4,8,128], index: 4, kind: input, shape index: {}]
  %s5 = inlined_call_operand.vmem [shape: f32[2,4,8,128], index: 5, kind: input, shape index: {}]
  %s6 = inlined_call_operand.vmem [shape: f32[2,4,8,128], index: 6, kind: output, shape index: {0}]
  %s7 = inlined_call_operand.vmem [shape: f32[2,4,8,128], index: 7, kind: output, shape index: {1}]
  %8 = xla_tuple %s6, %s7
  %s9 = sld [smem:[#allocation0]]
  $region49: #{fremlp_forward.1} parent=0
    _
  %s11 = ssub.s32 1, %s9
  %s12 = scalar_select 0, %s11, %s9
  %s13 = sshll.u32 %s0, 4
  %s14 = int_to_ptr.vmem [resolvable:$true] %s13
  %16 = dma.vmem_to_smem %s14, 128, [#allocation3], [#allocation2]
  %s17 = sshll.u32 %s1, 4
  %s18 = int_to_ptr.vmem [resolvable:$true] %s17
  %20 = dma.vmem_to_smem %s18, 16, [#allocation4], [#allocation2]
  %s21 = sshll.u32 %s2, 4
  %s22 = int_to_ptr.vmem [resolvable:$true] %s21
  %24 = dma.vmem_to_smem %s22, 64, [#allocation5], [#allocation2]
  %s25 = sshll.u32 %s3, 4
  %s26 = int_to_ptr.vmem [resolvable:$true] %s25
  %28 = dma.vmem_to_smem %s26, 16, [#allocation6], [#allocation2]
  %29 = dma.done [#allocation2], 224
  %30 = sfence
  loop: start=0, step=1, limit=4
  $region2: #{fremlp_forward.1} parent=0 // loop_pre_header
    _
  $region3: #{fremlp_forward.1} parent=0 // loop_header
    %s32 = sphi 0, %s36
    %p33 = scmp.ge.s32.totalorder %s32, 4
    %s39 = sphi 0, %s51
    %s40 = sphi 0, %s47
    %s41 = sphi 0, %s39
    %s42 = sphi 0, %s40
    %s43 = sphi 0, %s41
    %s44 = sphi 0, %s42
    %s56 = sphi 0, %s58
    %s59 = sphi 0, %s56
    %s60 = sphi 0, %s59
    %s76 = sphi 0, %s60
    %s84 = sphi 0, %s86
    %s87 = sphi 0, %s84
    %s88 = sphi 0, %s87
    %s104 = sphi 0, %s88
    %s112 = sphi 0, %s114
    %s115 = sphi 0, %s112
    %s116 = sphi 0, %s115
    %s132 = sphi 0, %s116
    %s140 = sphi 0, %s142
    %s143 = sphi 0, %s140
    %s144 = sphi 0, %s143
    %s160 = sphi 0, %s144
  $region4: #{fremlp_forward.1} parent=0 // loop_header_branch
    %35 = sbr.rel (%p33) target = $region8
  $region5: #{fremlp_forward.1} parent=0 // loop_body
    %s37 = ssub.s32 %s32, 1
    %s38 = ssub.s32 %s32, 2
    %s45 = sadd.s32 1, %s40
    %p46 = scmp.ge.s32.totalorder %s45, 1
    %s47 = scalar_select %p46, 0, %s45
    %s48 = sadd.s32 1, %s39
    %s49 = scalar_select %p46, %s48, %s39
    %p50 = scmp.ge.s32.totalorder %s49, 2
    %s51 = scalar_select %p50, 0, %s49
    %s52 = ssub.s32 %s39, %s51
    %s53 = ssub.s32 %s40, %s47
    %s54 = sor.u32 %s52, %s53
    %p55 = scmp.eq.s32.totalorder %s54, 0
    %s57 = sadd.s32 %s56, 1
    %s58 = scalar_select %p55, %s56, %s57
    %p61 = pneg %p55
    %p62 = scmp.eq.s32.totalorder %s32, 1
    %p63 = por %p61, %p62
    %p64 = scmp.ne.s32.totalorder %s56, %s59
    %p65 = scmp.eq.s32.totalorder %s32, 0
    %p66 = por %p64, %p65
    %p67 = scmp.ne.s32.totalorder %s56, %s59
    %p68 = scmp.eq.s32.totalorder %s37, 1
    %p69 = por %p67, %p68
    %p70 = scmp.ne.s32.totalorder %s59, %s60
    %p71 = scmp.eq.s32.totalorder %s37, 0
    %p72 = por %p70, %p71
    %p73 = scmp.ne.s32.totalorder %s59, %s60
    %p74 = scmp.eq.s32.totalorder %s38, 1
    %p75 = por %p73, %p74
    %p77 = scmp.ne.s32.totalorder %s60, %s76
    %p78 = scmp.eq.s32.totalorder %s38, 0
    %p79 = por %p77, %p78
    %s80 = ssub.s32 %s39, %s51
    %s81 = ssub.s32 %s40, %s47
    %s82 = sor.u32 %s80, %s81
    %p83 = scmp.eq.s32.totalorder %s82, 0
    %s85 = sadd.s32 %s84, 1
    %s86 = scalar_select %p83, %s84, %s85
    %p89 = pneg %p83
    %p90 = scmp.eq.s32.totalorder %s32, 1
    %p91 = por %p89, %p90
    %p92 = scmp.ne.s32.totalorder %s84, %s87
    %p93 = scmp.eq.s32.totalorder %s32, 0
    %p94 = por %p92, %p93
    %p95 = scmp.ne.s32.totalorder %s84, %s87
    %p96 = scmp.eq.s32.totalorder %s37, 1
    %p97 = por %p95, %p96
    %p98 = scmp.ne.s32.totalorder %s87, %s88
    %p99 = scmp.eq.s32.totalorder %s37, 0
    %p100 = por %p98, %p99
    %p101 = scmp.ne.s32.totalorder %s87, %s88
    %p102 = scmp.eq.s32.totalorder %s38, 1
    %p103 = por %p101, %p102
    %p105 = scmp.ne.s32.totalorder %s88, %s104
    %p106 = scmp.eq.s32.totalorder %s38, 0
    %p107 = por %p105, %p106
    %s108 = ssub.s32 %s39, %s51
    %s109 = ssub.s32 %s40, %s47
    %s110 = sor.u32 %s108, %s109
    %p111 = scmp.eq.s32.totalorder %s110, 0
    %s113 = sadd.s32 %s112, 1
    %s114 = scalar_select %p111, %s112, %s113
    %p117 = pneg %p111
    %p118 = scmp.eq.s32.totalorder %s32, 1
    %p119 = por %p117, %p118
    %p120 = scmp.ne.s32.totalorder %s112, %s115
    %p121 = scmp.eq.s32.totalorder %s32, 0
    %p122 = por %p120, %p121
    %p123 = scmp.ne.s32.totalorder %s112, %s115
    %p124 = scmp.eq.s32.totalorder %s37, 1
    %p125 = por %p123, %p124
    %p126 = scmp.ne.s32.totalorder %s115, %s116
    %p127 = scmp.eq.s32.totalorder %s37, 0
    %p128 = por %p126, %p127
    %p129 = scmp.ne.s32.totalorder %s115, %s116
    %p130 = scmp.eq.s32.totalorder %s38, 1
    %p131 = por %p129, %p130
    %p133 = scmp.ne.s32.totalorder %s116, %s132
    %p134 = scmp.eq.s32.totalorder %s38, 0
    %p135 = por %p133, %p134
    %s136 = ssub.s32 %s39, %s51
    %s137 = ssub.s32 %s40, %s47
    %s138 = sor.u32 %s136, %s137
    %p139 = scmp.eq.s32.totalorder %s138, 0
    %s141 = sadd.s32 %s140, 1
    %s142 = scalar_select %p139, %s140, %s141
    %p145 = pneg %p139
    %p146 = scmp.eq.s32.totalorder %s32, 1
    %p147 = por %p145, %p146
    %p148 = scmp.ne.s32.totalorder %s140, %s143
    %p149 = scmp.eq.s32.totalorder %s32, 0
    %p150 = por %p148, %p149
    %p151 = scmp.ne.s32.totalorder %s140, %s143
    %p152 = scmp.eq.s32.totalorder %s37, 1
    %p153 = por %p151, %p152
    %p154 = scmp.ne.s32.totalorder %s143, %s144
    %p155 = scmp.eq.s32.totalorder %s37, 0
    %p156 = por %p154, %p155
    %p157 = scmp.ne.s32.totalorder %s143, %s144
    %p158 = scmp.eq.s32.totalorder %s38, 1
    %p159 = por %p157, %p158
    %p161 = scmp.ne.s32.totalorder %s144, %s160
    %p162 = scmp.eq.s32.totalorder %s38, 0
    %p163 = por %p161, %p162
    %p164 = scmp.le.s32.totalorder 1, %s32
    %p165 = scmp.lt.s32.totalorder %s32, 3
    %p166 = pnand %p164, %p165
    %p167 = pneg %p166
    // Predicated region
    $region9: #{fremlp_forward.1} parent=5 // pred_check
      _
    $region10: #{fremlp_forward.1} parent=5 // pred_check_branch
      %169 = sbr.rel (%p166) target = $region12
    $region11: #{fremlp_forward.1} parent=5 // pred_region
      %s170 = ssub.s32 %s32, 1
    $region12: #{fremlp_forward.1} parent=5 // pred_fallthru
      _
    %p171 = scmp.lt.s32.totalorder %s32, 2
    // Predicated region
    $region13: #{fremlp_forward.1} parent=5 // pred_check
      %p172 = pneg %p171
    $region14: #{fremlp_forward.1} parent=5 // pred_check_branch
      %174 = sbr.rel (%p172) target = $region16
    $region15: #{fremlp_forward.1} parent=5 // pred_region
      // Predicated region
      $region17: #{fremlp_forward.1} parent=15 // pred_check
        %p175 = pneg %p66
      $region18: #{fremlp_forward.1} parent=15 // pred_check_branch
        %177 = sbr.rel (%p175) target = $region20
      $region19: #{fremlp_forward.1} parent=15 // pred_region
        %p178 = scmp.lt.s32.totalorder %s39, 1
        %s179 = scalar_select %p178, %s39, 1
        %p180 = scmp.lt.s32.totalorder %s40, 0
        %s181 = scalar_select %p180, %s40, 0
        %s182 = smul.addr %s179, 4
        %s183 = sadd.s32 %s181, %s182
        %s184 = smul.addr %s183, 8
        %s185 = scalar_lea.vmem %s4, %s184
      $region20: #{fremlp_forward.1} parent=15 // pred_fallthru
        _
      // Predicated region
      $region21: #{fremlp_forward.1} parent=15 // pred_check
        %p186 = pneg %p94
      $region22: #{fremlp_forward.1} parent=15 // pred_check_branch
        %188 = sbr.rel (%p186) target = $region24
      $region23: #{fremlp_forward.1} parent=15 // pred_region
        %p189 = scmp.lt.s32.totalorder %s39, 1
        %s190 = scalar_select %p189, %s39, 1
        %p191 = scmp.lt.s32.totalorder %s40, 0
        %s192 = scalar_select %p191, %s40, 0
        %s193 = smul.addr %s190, 4
        %s194 = sadd.s32 %s192, %s193
        %s195 = smul.addr %s194, 8
        %s196 = scalar_lea.vmem %s5, %s195
      $region24: #{fremlp_forward.1} parent=15 // pred_fallthru
        _
    $region16: #{fremlp_forward.1} parent=5 // pred_fallthru
      _
    %p197 = scmp.le.s32.totalorder 1, %s32
    %p198 = scmp.lt.s32.totalorder %s32, 3
    %p199 = pnand %p197, %p198
    %p200 = pneg %p199
    // Predicated region
    $region25: #{fremlp_forward.1} parent=5 // pred_check
      _
    $region26: #{fremlp_forward.1} parent=5 // pred_check_branch
      %202 = sbr.rel (%p199) target = $region28
    $region27: #{fremlp_forward.1} parent=5 // pred_region
      %s203 = ssub.s32 %s32, 1
      %p204 = scmp.lt.s32.totalorder %s41, 1
      %s205 = scalar_select %p204, %s41, 1
      %p206 = scmp.lt.s32.totalorder %s42, 0
      %s207 = scalar_select %p206, %s42, 0
      %s208 = smul.addr %s205, 4
      %s209 = sadd.s32 %s207, %s208
      %s210 = smul.addr %s209, 8
      %s211 = scalar_lea.vmem %s4, %s210
      %p212 = pneg %p72
      %p213 = pneg %p69
      %p214 = scmp.lt.s32.totalorder %s41, 1
      %s215 = scalar_select %p214, %s41, 1
      %p216 = scmp.lt.s32.totalorder %s42, 0
      %s217 = scalar_select %p216, %s42, 0
      %s218 = smul.addr %s215, 4
      %s219 = sadd.s32 %s217, %s218
      %s220 = smul.addr %s219, 8
      %s221 = scalar_lea.vmem %s5, %s220
      %p222 = pneg %p100
      %p223 = pneg %p97
      %p224 = pneg %p128
      %p225 = pneg %p125
      %p226 = scmp.lt.s32.totalorder %s41, 1
      %s227 = scalar_select %p226, %s41, 1
      %p228 = scmp.lt.s32.totalorder %s42, 0
      %s229 = scalar_select %p228, %s42, 0
      %s230 = smul.addr %s227, 4
      %s231 = sadd.s32 %s229, %s230
      %s232 = smul.addr %s231, 8
      %s233 = scalar_lea.vmem %s6, %s232
      %p234 = pneg %p156
      %p235 = pneg %p153
      %p236 = scmp.lt.s32.totalorder %s41, 1
      %s237 = scalar_select %p236, %s41, 1
      %p238 = scmp.lt.s32.totalorder %s42, 0
      %s239 = scalar_select %p238, %s42, 0
      %s240 = smul.addr %s237, 4
      %s241 = sadd.s32 %s239, %s240
      %s242 = smul.addr %s241, 8
      %s243 = scalar_lea.vmem %s7, %s242
      %p244 = scmp.lt.s32.totalorder %s41, 1
      %s245 = scalar_select %p244, %s41, 1
      %p246 = scmp.lt.s32.totalorder %s42, 0
      %s247 = scalar_select %p246, %s42, 0
      %s248 = smul.addr %s245, 4
      %s249 = sadd.s32 %s247, %s248
      %s250 = smul.addr %s249, 8
      %s251 = scalar_lea.vmem %s4, %s250
      %p252 = scmp.lt.s32.totalorder %s41, 1
      %s253 = scalar_select %p252, %s41, 1
      %p254 = scmp.lt.s32.totalorder %s42, 0
      %s255 = scalar_select %p254, %s42, 0
      %s256 = smul.addr %s253, 4
      %s257 = sadd.s32 %s255, %s256
      %s258 = smul.addr %s257, 8
      %s259 = scalar_lea.vmem %s5, %s258
      %p260 = scmp.lt.s32.totalorder %s41, 1
      %s261 = scalar_select %p260, %s41, 1
      %p262 = scmp.lt.s32.totalorder %s42, 0
      %s263 = scalar_select %p262, %s42, 0
      %s264 = smul.addr %s261, 4
      %s265 = sadd.s32 %s263, %s264
      %s266 = smul.addr %s265, 8
      %s267 = scalar_lea.vmem %s6, %s266
      %p268 = scmp.lt.s32.totalorder %s41, 1
      %s269 = scalar_select %p268, %s41, 1
      %p270 = scmp.lt.s32.totalorder %s42, 0
      %s271 = scalar_select %p270, %s42, 0
      %s272 = smul.addr %s269, 4
      %s273 = sadd.s32 %s271, %s272
      %s274 = smul.addr %s273, 8
      %s275 = scalar_lea.vmem %s7, %s274
      %v276 = vld [vmem:[%s251] sm:$0xff]
      %v277 = vld [vmem:[%s259] sm:$0xff]
      %v278 = vmul.f32 %v276, %v276
      %v279 = vmul.f32 %v277, %v277
      %v280 = vadd.f32 %v278, %v279
      %vm281 = vcmp.gt.f32.partialorder %v280, 0.0
      %v282 = vsel %vm281, %v280, 1.0
      %v283 = vrsqrt.pop %v282
      %v284 = vmul.f32 %v280, %v283
      %s285 = scalar_lea.vmem %s251, 8
      %v286 = vld [vmem:[%s285] sm:$0xff]
      %s287 = scalar_lea.vmem %s259, 8
      %v288 = vld [vmem:[%s287] sm:$0xff]
      %v289 = vmul.f32 %v286, %v286
      %v290 = vmul.f32 %v288, %v288
      %v291 = vadd.f32 %v289, %v290
      %vm292 = vcmp.gt.f32.partialorder %v291, 0.0
      %v293 = vsel %vm292, %v291, 1.0
      %v294 = vrsqrt.pop %v293
      %v295 = vmul.f32 %v291, %v294
      %s296 = scalar_lea.vmem %s251, 16
      %v297 = vld [vmem:[%s296] sm:$0xff]
      %s298 = scalar_lea.vmem %s259, 16
      %v299 = vld [vmem:[%s298] sm:$0xff]
      %v300 = vmul.f32 %v297, %v297
      %v301 = vmul.f32 %v299, %v299
      %v302 = vadd.f32 %v300, %v301
      %vm303 = vcmp.gt.f32.partialorder %v302, 0.0
      %v304 = vsel %vm303, %v302, 1.0
      %v305 = vrsqrt.pop %v304
      %v306 = vmul.f32 %v302, %v305
      %s307 = scalar_lea.vmem %s251, 24
      %v308 = vld [vmem:[%s307] sm:$0xff]
      %s309 = scalar_lea.vmem %s259, 24
      %v310 = vld [vmem:[%s309] sm:$0xff]
      %v311 = vmul.f32 %v308, %v308
      %v312 = vmul.f32 %v310, %v310
      %v313 = vadd.f32 %v311, %v312
      %vm314 = vcmp.gt.f32.partialorder %v313, 0.0
      %v315 = vsel %vm314, %v313, 1.0
      %v316 = vrsqrt.pop %v315
      %v317 = vmul.f32 %v313, %v316
      %s318 = sld [smem:[#allocation3]]
      %v319 = vstv %s318
      %v320 = vmul.f32 %v319, %v284
      %s321 = sld [smem:[#allocation3 + $0x1]]
      %v322 = vstv %s321
      %v323 = vmul.f32 %v322, %v295
      %v324 = vadd.f32 %v320, %v323
      %s325 = sld [smem:[#allocation3 + $0x2]]
      %v326 = vstv %s325
      %v327 = vmul.f32 %v326, %v306
      %v328 = vadd.f32 %v324, %v327
      %s329 = sld [smem:[#allocation3 + $0x3]]
      %v330 = vstv %s329
      %v331 = vmul.f32 %v330, %v317
      %v332 = vadd.f32 %v328, %v331
      %s333 = sld [smem:[#allocation4]]
      %v334 = vstv %s333
      %v335 = vadd.f32 %v332, %v334
      %v336 = vmul.f32 %v335, 0.1
      %v337 = vmax.f32 %v335, %v336
      %s338 = sld [smem:[#allocation5]]
      %v339 = vstv %s338
      %v340 = vmul.f32 %v339, %v337
      %s341 = sld [smem:[#allocation5 + $0x80]]
      %v342 = vstv %s341
      %v343 = vmul.f32 %v342, %v337
      %s344 = sld [smem:[#allocation5 + $0x100]]
      %v345 = vstv %s344
      %v346 = vmul.f32 %v345, %v337
      %s347 = sld [smem:[#allocation5 + $0x180]]
      %v348 = vstv %s347
      %v349 = vmul.f32 %v348, %v337
      %s350 = sld [smem:[#allocation3 + $0x80]]
      %v351 = vstv %s350
      %v352 = vmul.f32 %v351, %v284
      %s353 = sld [smem:[#allocation3 + $0x81]]
      %v354 = vstv %s353
      %v355 = vmul.f32 %v354, %v295
      %v356 = vadd.f32 %v352, %v355
      %s357 = sld [smem:[#allocation3 + $0x82]]
      %v358 = vstv %s357
      %v359 = vmul.f32 %v358, %v306
      %v360 = vadd.f32 %v356, %v359
      %s361 = sld [smem:[#allocation3 + $0x83]]
      %v362 = vstv %s361
      %v363 = vmul.f32 %v362, %v317
      %v364 = vadd.f32 %v360, %v363
      %s365 = sld [smem:[#allocation4 + $0x1]]
      %v366 = vstv %s365
      %v367 = vadd.f32 %v364, %v366
      %v368 = vmul.f32 %v367, 0.1
      %v369 = vmax.f32 %v367, %v368
      %s370 = sld [smem:[#allocation5 + $0x1]]
      %v371 = vstv %s370
      %v372 = vmul.f32 %v371, %v369
      %v373 = vadd.f32 %v340, %v372
      %s374 = sld [smem:[#allocation5 + $0x81]]
      %v375 = vstv %s374
      %v376 = vmul.f32 %v375, %v369
      %v377 = vadd.f32 %v343, %v376
      %s378 = sld [smem:[#allocation5 + $0x101]]
      %v379 = vstv %s378
      %v380 = vmul.f32 %v379, %v369
      %v381 = vadd.f32 %v346, %v380
      %s382 = sld [smem:[#allocation5 + $0x181]]
      %v383 = vstv %s382
      %v384 = vmul.f32 %v383, %v369
      %v385 = vadd.f32 %v349, %v384
      %s386 = sld [smem:[#allocation3 + $0x100]]
      %v387 = vstv %s386
      %v388 = vmul.f32 %v387, %v284
      %s389 = sld [smem:[#allocation3 + $0x101]]
      %v390 = vstv %s389
      %v391 = vmul.f32 %v390, %v295
      %v392 = vadd.f32 %v388, %v391
      %s393 = sld [smem:[#allocation3 + $0x102]]
      %v394 = vstv %s393
      %v395 = vmul.f32 %v394, %v306
      %v396 = vadd.f32 %v392, %v395
      %s397 = sld [smem:[#allocation3 + $0x103]]
      %v398 = vstv %s397
      %v399 = vmul.f32 %v398, %v317
      %v400 = vadd.f32 %v396, %v399
      %s401 = sld [smem:[#allocation4 + $0x2]]
      %v402 = vstv %s401
      %v403 = vadd.f32 %v400, %v402
      %v404 = vmul.f32 %v403, 0.1
      %v405 = vmax.f32 %v403, %v404
      %s406 = sld [smem:[#allocation5 + $0x2]]
      %v407 = vstv %s406
      %v408 = vmul.f32 %v407, %v405
      %v409 = vadd.f32 %v373, %v408
      %s410 = sld [smem:[#allocation5 + $0x82]]
      %v411 = vstv %s410
      %v412 = vmul.f32 %v411, %v405
      %v413 = vadd.f32 %v377, %v412
      %s414 = sld [smem:[#allocation5 + $0x102]]
      %v415 = vstv %s414
      %v416 = vmul.f32 %v415, %v405
      %v417 = vadd.f32 %v381, %v416
      %s418 = sld [smem:[#allocation5 + $0x182]]
      %v419 = vstv %s418
      %v420 = vmul.f32 %v419, %v405
      %v421 = vadd.f32 %v385, %v420
      %s422 = sld [smem:[#allocation3 + $0x180]]
      %v423 = vstv %s422
      %v424 = vmul.f32 %v423, %v284
      %s425 = sld [smem:[#allocation3 + $0x181]]
      %v426 = vstv %s425
      %v427 = vmul.f32 %v426, %v295
      %v428 = vadd.f32 %v424, %v427
      %s429 = sld [smem:[#allocation3 + $0x182]]
      %v430 = vstv %s429
      %v431 = vmul.f32 %v430, %v306
      %v432 = vadd.f32 %v428, %v431
      %s433 = sld [smem:[#allocation3 + $0x183]]
      %v434 = vstv %s433
      %v435 = vmul.f32 %v434, %v317
      %v436 = vadd.f32 %v432, %v435
      %s437 = sld [smem:[#allocation4 + $0x3]]
      %v438 = vstv %s437
      %v439 = vadd.f32 %v436, %v438
      %v440 = vmul.f32 %v439, 0.1
      %v441 = vmax.f32 %v439, %v440
      %s442 = sld [smem:[#allocation5 + $0x3]]
      %v443 = vstv %s442
      %v444 = vmul.f32 %v443, %v441
      %v445 = vadd.f32 %v409, %v444
      %s446 = sld [smem:[#allocation5 + $0x83]]
      %v447 = vstv %s446
      %v448 = vmul.f32 %v447, %v441
      %v449 = vadd.f32 %v413, %v448
      %s450 = sld [smem:[#allocation5 + $0x103]]
      %v451 = vstv %s450
      %v452 = vmul.f32 %v451, %v441
      %v453 = vadd.f32 %v417, %v452
      %s454 = sld [smem:[#allocation5 + $0x183]]
      %v455 = vstv %s454
      %v456 = vmul.f32 %v455, %v441
      %v457 = vadd.f32 %v421, %v456
      %s458 = sld [smem:[#allocation3 + $0x200]]
      %v459 = vstv %s458
      %v460 = vmul.f32 %v459, %v284
      %s461 = sld [smem:[#allocation3 + $0x201]]
      %v462 = vstv %s461
      %v463 = vmul.f32 %v462, %v295
      %v464 = vadd.f32 %v460, %v463
      %s465 = sld [smem:[#allocation3 + $0x202]]
      %v466 = vstv %s465
      %v467 = vmul.f32 %v466, %v306
      %v468 = vadd.f32 %v464, %v467
      %s469 = sld [smem:[#allocation3 + $0x203]]
      %v470 = vstv %s469
      %v471 = vmul.f32 %v470, %v317
      %v472 = vadd.f32 %v468, %v471
      %s473 = sld [smem:[#allocation4 + $0x4]]
      %v474 = vstv %s473
      %v475 = vadd.f32 %v472, %v474
      %v476 = vmul.f32 %v475, 0.1
      %v477 = vmax.f32 %v475, %v476
      %s478 = sld [smem:[#allocation5 + $0x4]]
      %v479 = vstv %s478
      %v480 = vmul.f32 %v479, %v477
      %v481 = vadd.f32 %v445, %v480
      %s482 = sld [smem:[#allocation5 + $0x84]]
      %v483 = vstv %s482
      %v484 = vmul.f32 %v483, %v477
      %v485 = vadd.f32 %v449, %v484
      %s486 = sld [smem:[#allocation5 + $0x104]]
      %v487 = vstv %s486
      %v488 = vmul.f32 %v487, %v477
      %v489 = vadd.f32 %v453, %v488
      %s490 = sld [smem:[#allocation5 + $0x184]]
      %v491 = vstv %s490
      %v492 = vmul.f32 %v491, %v477
      %v493 = vadd.f32 %v457, %v492
      %s494 = sld [smem:[#allocation3 + $0x280]]
      %v495 = vstv %s494
      %v496 = vmul.f32 %v495, %v284
      %s497 = sld [smem:[#allocation3 + $0x281]]
      %v498 = vstv %s497
      %v499 = vmul.f32 %v498, %v295
      %v500 = vadd.f32 %v496, %v499
      %s501 = sld [smem:[#allocation3 + $0x282]]
      %v502 = vstv %s501
      %v503 = vmul.f32 %v502, %v306
      %v504 = vadd.f32 %v500, %v503
      %s505 = sld [smem:[#allocation3 + $0x283]]
      %v506 = vstv %s505
      %v507 = vmul.f32 %v506, %v317
      %v508 = vadd.f32 %v504, %v507
      %s509 = sld [smem:[#allocation4 + $0x5]]
      %v510 = vstv %s509
      %v511 = vadd.f32 %v508, %v510
      %v512 = vmul.f32 %v511, 0.1
      %v513 = vmax.f32 %v511, %v512
      %s514 = sld [smem:[#allocation5 + $0x5]]
      %v515 = vstv %s514
      %v516 = vmul.f32 %v515, %v513
      %v517 = vadd.f32 %v481, %v516
      %s518 = sld [smem:[#allocation5 + $0x85]]
      %v519 = vstv %s518
      %v520 = vmul.f32 %v519, %v513
      %v521 = vadd.f32 %v485, %v520
      %s522 = sld [smem:[#allocation5 + $0x105]]
      %v523 = vstv %s522
      %v524 = vmul.f32 %v523, %v513
      %v525 = vadd.f32 %v489, %v524
      %s526 = sld [smem:[#allocation5 + $0x185]]
      %v527 = vstv %s526
      %v528 = vmul.f32 %v527, %v513
      %v529 = vadd.f32 %v493, %v528
      %s530 = sld [smem:[#allocation3 + $0x300]]
      %v531 = vstv %s530
      %v532 = vmul.f32 %v531, %v284
      %s533 = sld [smem:[#allocation3 + $0x301]]
      %v534 = vstv %s533
      %v535 = vmul.f32 %v534, %v295
      %v536 = vadd.f32 %v532, %v535
      %s537 = sld [smem:[#allocation3 + $0x302]]
      %v538 = vstv %s537
      %v539 = vmul.f32 %v538, %v306
      %v540 = vadd.f32 %v536, %v539
      %s541 = sld [smem:[#allocation3 + $0x303]]
      %v542 = vstv %s541
      %v543 = vmul.f32 %v542, %v317
      %v544 = vadd.f32 %v540, %v543
      %s545 = sld [smem:[#allocation4 + $0x6]]
      %v546 = vstv %s545
      %v547 = vadd.f32 %v544, %v546
      %v548 = vmul.f32 %v547, 0.1
      %v549 = vmax.f32 %v547, %v548
      %s550 = sld [smem:[#allocation5 + $0x6]]
      %v551 = vstv %s550
      %v552 = vmul.f32 %v551, %v549
      %v553 = vadd.f32 %v517, %v552
      %s554 = sld [smem:[#allocation5 + $0x86]]
      %v555 = vstv %s554
      %v556 = vmul.f32 %v555, %v549
      %v557 = vadd.f32 %v521, %v556
      %s558 = sld [smem:[#allocation5 + $0x106]]
      %v559 = vstv %s558
      %v560 = vmul.f32 %v559, %v549
      %v561 = vadd.f32 %v525, %v560
      %s562 = sld [smem:[#allocation5 + $0x186]]
      %v563 = vstv %s562
      %v564 = vmul.f32 %v563, %v549
      %v565 = vadd.f32 %v529, %v564
      %s566 = sld [smem:[#allocation3 + $0x380]]
      %v567 = vstv %s566
      %v568 = vmul.f32 %v567, %v284
      %s569 = sld [smem:[#allocation3 + $0x381]]
      %v570 = vstv %s569
      %v571 = vmul.f32 %v570, %v295
      %v572 = vadd.f32 %v568, %v571
      %s573 = sld [smem:[#allocation3 + $0x382]]
      %v574 = vstv %s573
      %v575 = vmul.f32 %v574, %v306
      %v576 = vadd.f32 %v572, %v575
      %s577 = sld [smem:[#allocation3 + $0x383]]
      %v578 = vstv %s577
      %v579 = vmul.f32 %v578, %v317
      %v580 = vadd.f32 %v576, %v579
      %s581 = sld [smem:[#allocation4 + $0x7]]
      %v582 = vstv %s581
      %v583 = vadd.f32 %v580, %v582
      %v584 = vmul.f32 %v583, 0.1
      %v585 = vmax.f32 %v583, %v584
      %s586 = sld [smem:[#allocation5 + $0x7]]
      %v587 = vstv %s586
      %v588 = vmul.f32 %v587, %v585
      %v589 = vadd.f32 %v553, %v588
      %s590 = sld [smem:[#allocation5 + $0x87]]
      %v591 = vstv %s590
      %v592 = vmul.f32 %v591, %v585
      %v593 = vadd.f32 %v557, %v592
      %s594 = sld [smem:[#allocation5 + $0x107]]
      %v595 = vstv %s594
      %v596 = vmul.f32 %v595, %v585
      %v597 = vadd.f32 %v561, %v596
      %s598 = sld [smem:[#allocation5 + $0x187]]
      %v599 = vstv %s598
      %v600 = vmul.f32 %v599, %v585
      %v601 = vadd.f32 %v565, %v600
      %s602 = sld [smem:[#allocation6]]
      %v603 = vstv %s602
      %v604 = vadd.f32 %v589, %v603
      %v605 = vmul.f32 %v604, %v283
      %v606 = vmul.f32 %v276, %v605
      %v607 = vsel %vm281, %v606, %v604
      %608 = vst [vmem:[%s267] sm:$0xff] %v607
      %v609 = vmul.f32 %v277, %v605
      %610 = vst [vmem:[%s275] sm:$0xff] %v609
      %s611 = sld [smem:[#allocation6 + $0x1]]
      %v612 = vstv %s611
      %v613 = vadd.f32 %v593, %v612
      %v614 = vmul.f32 %v613, %v294
      %v615 = vld [vmem:[%s285] sm:$0xff]
      %v616 = vld [vmem:[%s287] sm:$0xff]
      %v617 = vmul.f32 %v615, %v614
      %v618 = vsel %vm292, %v617, %v613
      %s619 = scalar_lea.vmem %s267, 8
      %620 = vst [vmem:[%s619] sm:$0xff] %v618
      %v621 = vmul.f32 %v616, %v614
      %s622 = scalar_lea.vmem %s275, 8
      %623 = vst [vmem:[%s622] sm:$0xff] %v621
      %s624 = sld [smem:[#allocation6 + $0x2]]
      %v625 = vstv %s624
      %v626 = vadd.f32 %v597, %v625
      %v627 = vmul.f32 %v626, %v305
      %v628 = vld [vmem:[%s296] sm:$0xff]
      %v629 = vld [vmem:[%s298] sm:$0xff]
      %v630 = vmul.f32 %v628, %v627
      %v631 = vsel %vm303, %v630, %v626
      %s632 = scalar_lea.vmem %s267, 16
      %633 = vst [vmem:[%s632] sm:$0xff] %v631
      %v634 = vmul.f32 %v629, %v627
      %s635 = scalar_lea.vmem %s275, 16
      %636 = vst [vmem:[%s635] sm:$0xff] %v634
      %s637 = sld [smem:[#allocation6 + $0x3]]
      %v638 = vstv %s637
      %v639 = vadd.f32 %v601, %v638
      %v640 = vmul.f32 %v639, %v316
      %v641 = vld [vmem:[%s307] sm:$0xff]
      %v642 = vld [vmem:[%s309] sm:$0xff]
      %v643 = vmul.f32 %v641, %v640
      %v644 = vsel %vm314, %v643, %v639
      %s645 = scalar_lea.vmem %s267, 24
      %646 = vst [vmem:[%s645] sm:$0xff] %v644
      %v647 = vmul.f32 %v642, %v640
      %s648 = scalar_lea.vmem %s275, 24
      %649 = vst [vmem:[%s648] sm:$0xff] %v647
      %p650 = scmp.lt.s32.totalorder %s41, 1
      %s651 = scalar_select %p650, %s41, 1
      %p652 = scmp.lt.s32.totalorder %s42, 0
      %s653 = scalar_select %p652, %s42, 0
      %s654 = smul.addr %s651, 4
      %s655 = sadd.s32 %s653, %s654
      %s656 = smul.addr %s655, 8
      %s657 = scalar_lea.vmem %s6, %s656
      %p658 = scmp.lt.s32.totalorder %s41, 1
      %s659 = scalar_select %p658, %s41, 1
      %p660 = scmp.lt.s32.totalorder %s42, 0
      %s661 = scalar_select %p660, %s42, 0
      %s662 = smul.addr %s659, 4
      %s663 = sadd.s32 %s661, %s662
      %s664 = smul.addr %s663, 8
      %s665 = scalar_lea.vmem %s7, %s664
      // Predicated region
      $region29: #{fremlp_forward.1} parent=27 // pred_check
        %p666 = pneg %p125
      $region30: #{fremlp_forward.1} parent=27 // pred_check_branch
        %668 = sbr.rel (%p666) target = $region32
      $region31: #{fremlp_forward.1} parent=27 // pred_region
        _
      $region32: #{fremlp_forward.1} parent=27 // pred_fallthru
        _
      // Predicated region
      $region33: #{fremlp_forward.1} parent=27 // pred_check
        %p669 = pneg %p153
      $region34: #{fremlp_forward.1} parent=27 // pred_check_branch
        %671 = sbr.rel (%p669) target = $region36
      $region35: #{fremlp_forward.1} parent=27 // pred_region
        _
      $region36: #{fremlp_forward.1} parent=27 // pred_fallthru
        _
    $region28: #{fremlp_forward.1} parent=5 // pred_fallthru
      _
    %p672 = scmp.le.s32.totalorder 2, %s32
    // Predicated region
    $region37: #{fremlp_forward.1} parent=5 // pred_check
      %p673 = pneg %p672
    $region38: #{fremlp_forward.1} parent=5 // pred_check_branch
      %675 = sbr.rel (%p673) target = $region40
    $region39: #{fremlp_forward.1} parent=5 // pred_region
      %s676 = ssub.s32 %s32, 2
      // Predicated region
      $region41: #{fremlp_forward.1} parent=39 // pred_check
        %p677 = pneg %p131
      $region42: #{fremlp_forward.1} parent=39 // pred_check_branch
        %679 = sbr.rel (%p677) target = $region44
      $region43: #{fremlp_forward.1} parent=39 // pred_region
        %p680 = scmp.lt.s32.totalorder %s43, 1
        %s681 = scalar_select %p680, %s43, 1
        %p682 = scmp.lt.s32.totalorder %s44, 0
        %s683 = scalar_select %p682, %s44, 0
        %s684 = smul.addr %s681, 4
        %s685 = sadd.s32 %s683, %s684
        %s686 = smul.addr %s685, 8
        %s687 = scalar_lea.vmem %s6, %s686
      $region44: #{fremlp_forward.1} parent=39 // pred_fallthru
        _
      // Predicated region
      $region45: #{fremlp_forward.1} parent=39 // pred_check
        %p688 = pneg %p159
      $region46: #{fremlp_forward.1} parent=39 // pred_check_branch
        %690 = sbr.rel (%p688) target = $region48
      $region47: #{fremlp_forward.1} parent=39 // pred_region
        %p691 = scmp.lt.s32.totalorder %s43, 1
        %s692 = scalar_select %p691, %s43, 1
        %p693 = scmp.lt.s32.totalorder %s44, 0
        %s694 = scalar_select %p693, %s44, 0
        %s695 = smul.addr %s692, 4
        %s696 = sadd.s32 %s694, %s695
        %s697 = smul.addr %s696, 8
        %s698 = scalar_lea.vmem %s7, %s697
      $region48: #{fremlp_forward.1} parent=39 // pred_fallthru
        _
    $region40: #{fremlp_forward.1} parent=5 // pred_fallthru
      _
  $region6: #{fremlp_forward.1} parent=0 // loop_footer
    %s36 = sadd.s32 1, %s32
  $region7: #{fremlp_forward.1} parent=0 // loop_footer_branch
    %31 = sbr.rel target = $region3
  $region8: #{fremlp_forward.1} parent=0 // loop_exit
    _

</llo_original>
